<compile_context>
chip_gen: v7x
topology: tpu7x:2x2x1
jax: 0.10.0
libtpu: 0.0.40
codegen_flags: <defaults>
</compile_context>

<pallas_src>
import functools

import jax
import jax.numpy as jnp
from jax.experimental import pallas as pl
from jax.experimental.pallas import tpu as pltpu


def _round_up(x, m):
    return (x + m - 1) // m * m


@functools.partial(jax.jit, static_argnames=("block_m",))
def embedding_tag_ext_forward(word_vectors, char_vectors, pos_vectors, ner_vectors,
                              conv_w, conv_b, w_proj,
                              wg0, bg0, wt0, bt0, wg1, bg1, wt1, bt1,
                              x_word, x_char, x_pos, x_ner, x_em, x_tf,
                              block_m=512):
    """Forward pass of Embedding_Tag_Ext (inference: dropout is identity).

    word_vectors: (Vw, Ew) f32     char_vectors: (Vc, C) f32
    pos_vectors:  (Np, Np) f32     ner_vectors:  (Nn, Nn) f32
    conv_w: (f, C, k) f32 (PyTorch Conv1d layout, f == Ew), conv_b: (f,) f32
    w_proj: (D, H) f32 with D = 2*Ew + Np + Nn + 2 (math layout: y = x @ w)
    wg*/wt*: (H, H) f32 (math layout), bg*/bt*: (H,) f32
    x_word/x_pos/x_ner/x_em: (B, S) int32, x_char: (B, S, Wlen) int32,
    x_tf: (B, S) f32
    returns: (B, S, H) f32
    """
    B, S = x_word.shape
    Wlen = x_char.shape[2]
    C = char_vectors.shape[1]
    Ew = word_vectors.shape[1]
    f, _, k = conv_w.shape                      # n_filters == Ew, kernel size
    n_pos = pos_vectors.shape[1]
    n_ner = ner_vectors.shape[1]
    H = w_proj.shape[1]
    T = n_pos + n_ner + 2                       # tag feature width
    N = B * S
    L_out = Wlen - k + 1
    H_pad = _round_up(H, 128)
    f_pad = _round_up(f, 128)

    # ---------------- gathers + feature assembly (XLA glue) ----------------
    emb_word = jnp.take(word_vectors, x_word.reshape(-1), axis=0)        # (N, Ew)
    emb_pos = jnp.take(pos_vectors, x_pos.reshape(-1), axis=0)           # (N, Np)
    emb_ner = jnp.take(ner_vectors, x_ner.reshape(-1), axis=0)           # (N, Nn)
    emb_em = x_em.reshape(N, 1).astype(jnp.float32)
    emb_tf = x_tf.reshape(N, 1).astype(jnp.float32)
    # word ⊕ tag features, bf16 row slab
    xa = jnp.concatenate([emb_word, emb_pos, emb_ner, emb_em, emb_tf],
                         axis=1).astype(jnp.bfloat16)                    # (N, Ew+T)
    # char embeddings, flattened position-major / channel-minor, bf16 row slab
    emb_ch = jnp.take(char_vectors, x_char.reshape(-1), axis=0)          # (N*Wlen, C)
    xc = emb_ch.reshape(N, Wlen * C).astype(jnp.bfloat16)                # (N, Wlen*C)
    # TODO(synk): F.dropout with training=True not implemented (inference path only).
    # TODO(synk): the embedding gathers stay in XLA; fusing them via scalar-prefetch
    #             row DMAs is possible but row payloads are too small to pay off here.

    # ------------- weight packing / lane padding (bf16 MXU operands) -------------
    # Conv1d weight unfolded to (k*C, f): rows ordered [window position, channel],
    # matching the window slices taken from the flattened char slab.
    w_unf = jnp.transpose(conv_w, (2, 1, 0)).reshape(k * C, f)
    wconv_p = jnp.pad(w_unf, ((0, 0), (0, f_pad - f))).astype(jnp.bfloat16)
    bconv_p = jnp.pad(conv_b.reshape(1, f), ((0, 0), (0, f_pad - f)))    # f32 (1, f_pad)

    # Projection rows follow the PyTorch concat order (word, char, pos, ner, em, tf);
    # split into [word⊕tag] and [char] parts so we never materialize the full concat.
    wp_word = w_proj[:Ew]
    wp_char = w_proj[Ew:Ew + f]
    wp_tag = w_proj[Ew + f:]
    wpa_p = jnp.pad(jnp.concatenate([wp_word, wp_tag], axis=0),
                    ((0, 0), (0, H_pad - H))).astype(jnp.bfloat16)       # (Ew+T, H_pad)
    wpb_p = jnp.pad(wp_char,
                    ((0, f_pad - f), (0, H_pad - H))).astype(jnp.bfloat16)  # (f_pad, H_pad)

    def pack_hwy(wg, bg, wt, bt):
        wg_p = jnp.pad(wg, ((0, H_pad - H), (0, H_pad - H)))
        wt_p = jnp.pad(wt, ((0, H_pad - H), (0, H_pad - H)))
        w = jnp.concatenate([wg_p, wt_p], axis=1).astype(jnp.bfloat16)   # (H_pad, 2*H_pad)
        b = jnp.concatenate(
            [jnp.pad(bg.reshape(1, H), ((0, 0), (0, H_pad - H))),
             jnp.pad(bt.reshape(1, H), ((0, 0), (0, H_pad - H)))], axis=1)  # f32 (1, 2*H_pad)
        return w, b

    wh0, bh0 = pack_hwy(wg0, bg0, wt0, bt0)
    wh1, bh1 = pack_hwy(wg1, bg1, wt1, bt1)

    # ------------------------------ Pallas kernel ------------------------------
    def kernel(xa_ref, xc_ref, wpa_ref, wpb_ref, wconv_ref, bconv_ref,
               wh0_ref, bh0_ref, wh1_ref, bh1_ref, out_ref):
        # Char CNN: conv1d(VALID) as L_out window matmuls + running max over
        # positions.  Bias-add and relu are hoisted out of the loop:
        #   max_p relu(z_p + b) == relu(max_p(z_p) + b)   (b constant over p).
        mx = None
        for p in range(L_out):                              # static, unrolled
            win = xc_ref[:, p * C:(p + k) * C]              # (bm, k*C) bf16
            z = jnp.dot(win, wconv_ref[...],
                        preferred_element_type=jnp.float32)
            mx = z if mx is None else jnp.maximum(mx, z)    # max over positions
        mx = jnp.maximum(mx + bconv_ref[...], 0.0)          # bias + relu once (f32)

        # Bias-free projection: [word ⊕ tag] part + char-CNN part.
        x = jnp.dot(xa_ref[...], wpa_ref[...], preferred_element_type=jnp.float32)
        x = x + jnp.dot(mx.astype(jnp.bfloat16), wpb_ref[...],
                        preferred_element_type=jnp.float32)

        # Two highway layers with fused [gate | transform] weights.
        for w_ref, b_ref in ((wh0_ref, bh0_ref), (wh1_ref, bh1_ref)):
            gt = jnp.dot(x.astype(jnp.bfloat16), w_ref[...],
                         preferred_element_type=jnp.float32) + b_ref[...]
            g = jax.nn.sigmoid(gt[:, :H_pad])
            t = jnp.maximum(gt[:, H_pad:], 0.0)
            x = x + g * (t - x)                             # == g*t + (1-g)*x

        out_ref[...] = x.astype(out_ref.dtype)

    bm = min(block_m, _round_up(N, 8))
    grid = (pl.cdiv(N, bm),)
    row = lambda i: (i, 0)
    full = lambda i: (0, 0)

    out = pl.pallas_call(
        kernel,
        out_shape=jax.ShapeDtypeStruct((N, H_pad), jnp.float32),
        grid_spec=pltpu.PrefetchScalarGridSpec(
            num_scalar_prefetch=0,
            grid=grid,
            in_specs=[
                pl.BlockSpec((bm, Ew + T), row),           # word ⊕ tag features
                pl.BlockSpec((bm, Wlen * C), row),         # char embeddings (flat)
                pl.BlockSpec((Ew + T, H_pad), full),       # proj (word ⊕ tag rows)
                pl.BlockSpec((f_pad, H_pad), full),        # proj (char rows)
                pl.BlockSpec((k * C, f_pad), full),        # conv weight (unfolded)
                pl.BlockSpec((1, f_pad), full),            # conv bias
                pl.BlockSpec((H_pad, 2 * H_pad), full),    # highway 0 [gate|transform]
                pl.BlockSpec((1, 2 * H_pad), full),        # highway 0 bias
                pl.BlockSpec((H_pad, 2 * H_pad), full),    # highway 1 [gate|transform]
                pl.BlockSpec((1, 2 * H_pad), full),        # highway 1 bias
            ],
            out_specs=pl.BlockSpec((bm, H_pad), row),
        ),
        compiler_params=pltpu.CompilerParams(
            dimension_semantics=("parallel",),             # shards across v7x's 2 TCs
            vmem_limit_bytes=48 * 1024 * 1024,             # explicit; fits v7x 64 MiB
        ),
    )(xa, xc, wpa_p, wpb_p, wconv_p, bconv_p, wh0, bh0, wh1, bh1)

    return out[:, :H].reshape(B, S, H)


def _reference_forward(word_vectors, char_vectors, pos_vectors, ner_vectors,
                       conv_w, conv_b, w_proj, hwy_params,
                       x_word, x_char, x_pos, x_ner, x_em, x_tf):
    """Pure-JAX f32 reference matching the PyTorch module (eval mode)."""
    B, S, Wlen = x_char.shape
    f, C, k = conv_w.shape
    N = B * S
    L = Wlen - k + 1

    emb_word = jnp.take(word_vectors, x_word, axis=0)                    # (B,S,Ew)
    ch = jnp.take(char_vectors, x_char.reshape(N, Wlen), axis=0)         # (N,Wlen,C)
    ch = jnp.transpose(ch, (0, 2, 1))                                    # (N,C,Wlen)
    conv = conv_b.reshape(1, f, 1)
    for dk in range(k):
        conv = conv + jnp.einsum('ncl,oc->nol', ch[:, :, dk:dk + L], conv_w[:, :, dk])
    emb_char = jnp.max(jax.nn.relu(conv), axis=2).reshape(B, S, f)

    emb_pos = jnp.take(pos_vectors, x_pos, axis=0)
    emb_ner = jnp.take(ner_vectors, x_ner, axis=0)
    emb_em = x_em[..., None].astype(jnp.float32)
    emb_tf = x_tf[..., None].astype(jnp.float32)
    emb = jnp.concatenate([emb_word, emb_char, emb_pos, emb_ner, emb_em, emb_tf], axis=-1)
    # dropout: identity in eval mode
    x = emb @ w_proj
    for wg, bg, wt, bt in hwy_params:
        g = jax.nn.sigmoid(x @ wg + bg)
        t = jax.nn.relu(x @ wt + bt)
        x = g * t + (1.0 - g) * x
    return x


if __name__ == "__main__":
    # Small synthetic config consistent with the module.
    B, S, Wlen = 2, 64, 16            # batch, seq len, max word length
    word_vocab, Ew = 100, 32          # word vocab, word embedding size (== n_filters)
    char_vocab, C = 50, 8             # char vocab, char embedding size
    n_pos, n_ner = 8, 4               # tag one-hot sizes
    H = 32                            # hidden size
    k_conv = 5
    drop_prob = 0.1                   # unused (inference)

    key = jax.random.PRNGKey(0)
    ks = jax.random.split(key, 20)

    word_vectors = jax.random.normal(ks[0], (word_vocab, Ew), jnp.float32) * 0.1
    char_vectors = jax.random.normal(ks[1], (char_vocab, C), jnp.float32) * 0.1
    pos_vectors = jnp.eye(n_pos, dtype=jnp.float32)
    ner_vectors = jnp.eye(n_ner, dtype=jnp.float32)
    conv_w = jax.random.normal(ks[2], (Ew, C, k_conv), jnp.float32) * 0.1    # (f, C, k)
    conv_b = jax.random.normal(ks[3], (Ew,), jnp.float32) * 0.1
    D = 2 * Ew + n_pos + n_ner + 2
    w_proj = jax.random.normal(ks[4], (D, H), jnp.float32) * 0.1             # (in, out)
    wg0 = jax.random.normal(ks[5], (H, H), jnp.float32) * 0.1
    bg0 = jax.random.normal(ks[6], (H,), jnp.float32) * 0.1
    wt0 = jax.random.normal(ks[7], (H, H), jnp.float32) * 0.1
    bt0 = jax.random.normal(ks[8], (H,), jnp.float32) * 0.1
    wg1 = jax.random.normal(ks[9], (H, H), jnp.float32) * 0.1
    bg1 = jax.random.normal(ks[10], (H,), jnp.float32) * 0.1
    wt1 = jax.random.normal(ks[11], (H, H), jnp.float32) * 0.1
    bt1 = jax.random.normal(ks[12], (H,), jnp.float32) * 0.1

    x_word = jax.random.randint(ks[13], (B, S), 0, word_vocab, jnp.int32)
    x_char = jax.random.randint(ks[14], (B, S, Wlen), 0, char_vocab, jnp.int32)
    x_pos = jax.random.randint(ks[15], (B, S), 0, n_pos, jnp.int32)
    x_ner = jax.random.randint(ks[16], (B, S), 0, n_ner, jnp.int32)
    x_em = jax.random.randint(ks[17], (B, S), 0, 2, jnp.int32)
    x_tf = jax.random.uniform(ks[18], (B, S), jnp.float32)

    # block_m=64 here only to exercise a multi-step parallel grid at these tiny
    # demo shapes; production sizes should use the default block_m=512.
    out = embedding_tag_ext_forward(word_vectors, char_vectors, pos_vectors, ner_vectors,
                                    conv_w, conv_b, w_proj,
                                    wg0, bg0, wt0, bt0, wg1, bg1, wt1, bt1,
                                    x_word, x_char, x_pos, x_ner, x_em, x_tf,
                                    block_m=64)
    out = jax.block_until_ready(out)

    ref = _reference_forward(word_vectors, char_vectors, pos_vectors, ner_vectors,
                             conv_w, conv_b, w_proj,
                             [(wg0, bg0, wt0, bt0), (wg1, bg1, wt1, bt1)],
                             x_word, x_char, x_pos, x_ner, x_em, x_tf)

    assert out.shape == (B, S, H), out.shape
    max_err = float(jnp.max(jnp.abs(out - ref)))
    # bf16 MXU operands with f32 accumulation -> small deviation vs f32 reference.
    assert max_err < 2e-2, f"mismatch vs reference: max abs err {max_err}"

    print("KERNEL_OK")
</pallas_src>

<mosaic_0001>
module attributes {stable_mosaic.version = 11 : i64} {
  func.func @kernel(%arg0: i32, %arg1: memref<64x46xbf16, #tpu.memory_space<vmem>>, %arg2: memref<64x128xbf16, #tpu.memory_space<vmem>>, %arg3: memref<46x128xbf16, #tpu.memory_space<vmem>>, %arg4: memref<128x128xbf16, #tpu.memory_space<vmem>>, %arg5: memref<40x128xbf16, #tpu.memory_space<vmem>>, %arg6: memref<1x128xf32, #tpu.memory_space<vmem>>, %arg7: memref<128x256xbf16, #tpu.memory_space<vmem>>, %arg8: memref<1x256xf32, #tpu.memory_space<vmem>>, %arg9: memref<128x256xbf16, #tpu.memory_space<vmem>>, %arg10: memref<1x256xf32, #tpu.memory_space<vmem>>, %arg11: memref<64x128xf32, #tpu.memory_space<vmem>>) attributes {dimension_semantics = [#tpu.dimension_semantics<parallel>], iteration_bounds = array<i64: 2>, scalar_prefetch = 0 : i64, scratch_operands = 0 : i64, tpu.core_type = #tpu.core_type<tc>, window_params = [{transform_indices = @transform_0, window_bounds = array<i64: 64, 46>}, {transform_indices = @transform_1, window_bounds = array<i64: 64, 128>}, {pipeline_mode = #tpu.pipeline_mode<synchronous>, transform_indices = @transform_2, window_bounds = array<i64: 46, 128>}, {pipeline_mode = #tpu.pipeline_mode<synchronous>, transform_indices = @transform_3, window_bounds = array<i64: 128, 128>}, {pipeline_mode = #tpu.pipeline_mode<synchronous>, transform_indices = @transform_4, window_bounds = array<i64: 40, 128>}, {pipeline_mode = #tpu.pipeline_mode<synchronous>, transform_indices = @transform_5, window_bounds = array<i64: 1, 128>}, {pipeline_mode = #tpu.pipeline_mode<synchronous>, transform_indices = @transform_6, window_bounds = array<i64: 128, 256>}, {pipeline_mode = #tpu.pipeline_mode<synchronous>, transform_indices = @transform_7, window_bounds = array<i64: 1, 256>}, {pipeline_mode = #tpu.pipeline_mode<synchronous>, transform_indices = @transform_8, window_bounds = array<i64: 128, 256>}, {pipeline_mode = #tpu.pipeline_mode<synchronous>, transform_indices = @transform_9, window_bounds = array<i64: 1, 256>}, {transform_indices = @transform_10, window_bounds = array<i64: 64, 128>}]} {
    %c0 = arith.constant 0 : index
    %c0_0 = arith.constant 0 : index
    %0 = vector.load %arg2[%c0, %c0_0] : memref<64x128xbf16, #tpu.memory_space<vmem>>, vector<64x40xbf16>
    %c0_1 = arith.constant 0 : index
    %c0_2 = arith.constant 0 : index
    %1 = vector.load %arg5[%c0_1, %c0_2] : memref<40x128xbf16, #tpu.memory_space<vmem>>, vector<40x128xbf16>
    %cst = arith.constant dense<0.000000e+00> : vector<64x128xf32>
    %2 = tpu.matmul %0, %1, %cst {dimension_numbers = #tpu.dot_dimension_numbers<[1], [0], [0], [1], [0, 0, 1, 1], [], []>} : vector<64x40xbf16>, vector<40x128xbf16>, vector<64x128xf32> -> vector<64x128xf32>
    %c0_3 = arith.constant 0 : index
    %c8 = arith.constant 8 : index
    %3 = vector.load %arg2[%c0_3, %c8] : memref<64x128xbf16, #tpu.memory_space<vmem>>, vector<64x40xbf16>
    %c0_4 = arith.constant 0 : index
    %c0_5 = arith.constant 0 : index
    %4 = vector.load %arg5[%c0_4, %c0_5] : memref<40x128xbf16, #tpu.memory_space<vmem>>, vector<40x128xbf16>
    %cst_6 = arith.constant dense<0.000000e+00> : vector<64x128xf32>
    %5 = tpu.matmul %3, %4, %cst_6 {dimension_numbers = #tpu.dot_dimension_numbers<[1], [0], [0], [1], [0, 0, 1, 1], [], []>} : vector<64x40xbf16>, vector<40x128xbf16>, vector<64x128xf32> -> vector<64x128xf32>
    %6 = arith.maximumf %2, %5 : vector<64x128xf32>
    %c0_7 = arith.constant 0 : index
    %c16 = arith.constant 16 : index
    %7 = vector.load %arg2[%c0_7, %c16] : memref<64x128xbf16, #tpu.memory_space<vmem>>, vector<64x40xbf16>
    %c0_8 = arith.constant 0 : index
    %c0_9 = arith.constant 0 : index
    %8 = vector.load %arg5[%c0_8, %c0_9] : memref<40x128xbf16, #tpu.memory_space<vmem>>, vector<40x128xbf16>
    %cst_10 = arith.constant dense<0.000000e+00> : vector<64x128xf32>
    %9 = tpu.matmul %7, %8, %cst_10 {dimension_numbers = #tpu.dot_dimension_numbers<[1], [0], [0], [1], [0, 0, 1, 1], [], []>} : vector<64x40xbf16>, vector<40x128xbf16>, vector<64x128xf32> -> vector<64x128xf32>
    %10 = arith.maximumf %6, %9 : vector<64x128xf32>
    %c0_11 = arith.constant 0 : index
    %c24 = arith.constant 24 : index
    %11 = vector.load %arg2[%c0_11, %c24] : memref<64x128xbf16, #tpu.memory_space<vmem>>, vector<64x40xbf16>
    %c0_12 = arith.constant 0 : index
    %c0_13 = arith.constant 0 : index
    %12 = vector.load %arg5[%c0_12, %c0_13] : memref<40x128xbf16, #tpu.memory_space<vmem>>, vector<40x128xbf16>
    %cst_14 = arith.constant dense<0.000000e+00> : vector<64x128xf32>
    %13 = tpu.matmul %11, %12, %cst_14 {dimension_numbers = #tpu.dot_dimension_numbers<[1], [0], [0], [1], [0, 0, 1, 1], [], []>} : vector<64x40xbf16>, vector<40x128xbf16>, vector<64x128xf32> -> vector<64x128xf32>
    %14 = arith.maximumf %10, %13 : vector<64x128xf32>
    %c0_15 = arith.constant 0 : index
    %c32 = arith.constant 32 : index
    %15 = vector.load %arg2[%c0_15, %c32] : memref<64x128xbf16, #tpu.memory_space<vmem>>, vector<64x40xbf16>
    %c0_16 = arith.constant 0 : index
    %c0_17 = arith.constant 0 : index
    %16 = vector.load %arg5[%c0_16, %c0_17] : memref<40x128xbf16, #tpu.memory_space<vmem>>, vector<40x128xbf16>
    %cst_18 = arith.constant dense<0.000000e+00> : vector<64x128xf32>
    %17 = tpu.matmul %15, %16, %cst_18 {dimension_numbers = #tpu.dot_dimension_numbers<[1], [0], [0], [1], [0, 0, 1, 1], [], []>} : vector<64x40xbf16>, vector<40x128xbf16>, vector<64x128xf32> -> vector<64x128xf32>
    %18 = arith.maximumf %14, %17 : vector<64x128xf32>
    %c0_19 = arith.constant 0 : index
    %c40 = arith.constant 40 : index
    %19 = vector.load %arg2[%c0_19, %c40] : memref<64x128xbf16, #tpu.memory_space<vmem>>, vector<64x40xbf16>
    %c0_20 = arith.constant 0 : index
    %c0_21 = arith.constant 0 : index
    %20 = vector.load %arg5[%c0_20, %c0_21] : memref<40x128xbf16, #tpu.memory_space<vmem>>, vector<40x128xbf16>
    %cst_22 = arith.constant dense<0.000000e+00> : vector<64x128xf32>
    %21 = tpu.matmul %19, %20, %cst_22 {dimension_numbers = #tpu.dot_dimension_numbers<[1], [0], [0], [1], [0, 0, 1, 1], [], []>} : vector<64x40xbf16>, vector<40x128xbf16>, vector<64x128xf32> -> vector<64x128xf32>
    %22 = arith.maximumf %18, %21 : vector<64x128xf32>
    %c0_23 = arith.constant 0 : index
    %c48 = arith.constant 48 : index
    %23 = vector.load %arg2[%c0_23, %c48] : memref<64x128xbf16, #tpu.memory_space<vmem>>, vector<64x40xbf16>
    %c0_24 = arith.constant 0 : index
    %c0_25 = arith.constant 0 : index
    %24 = vector.load %arg5[%c0_24, %c0_25] : memref<40x128xbf16, #tpu.memory_space<vmem>>, vector<40x128xbf16>
    %cst_26 = arith.constant dense<0.000000e+00> : vector<64x128xf32>
    %25 = tpu.matmul %23, %24, %cst_26 {dimension_numbers = #tpu.dot_dimension_numbers<[1], [0], [0], [1], [0, 0, 1, 1], [], []>} : vector<64x40xbf16>, vector<40x128xbf16>, vector<64x128xf32> -> vector<64x128xf32>
    %26 = arith.maximumf %22, %25 : vector<64x128xf32>
    %c0_27 = arith.constant 0 : index
    %c56 = arith.constant 56 : index
    %27 = vector.load %arg2[%c0_27, %c56] : memref<64x128xbf16, #tpu.memory_space<vmem>>, vector<64x40xbf16>
    %c0_28 = arith.constant 0 : index
    %c0_29 = arith.constant 0 : index
    %28 = vector.load %arg5[%c0_28, %c0_29] : memref<40x128xbf16, #tpu.memory_space<vmem>>, vector<40x128xbf16>
    %cst_30 = arith.constant dense<0.000000e+00> : vector<64x128xf32>
    %29 = tpu.matmul %27, %28, %cst_30 {dimension_numbers = #tpu.dot_dimension_numbers<[1], [0], [0], [1], [0, 0, 1, 1], [], []>} : vector<64x40xbf16>, vector<40x128xbf16>, vector<64x128xf32> -> vector<64x128xf32>
    %30 = arith.maximumf %26, %29 : vector<64x128xf32>
    %c0_31 = arith.constant 0 : index
    %c64 = arith.constant 64 : index
    %31 = vector.load %arg2[%c0_31, %c64] : memref<64x128xbf16, #tpu.memory_space<vmem>>, vector<64x40xbf16>
    %c0_32 = arith.constant 0 : index
    %c0_33 = arith.constant 0 : index
    %32 = vector.load %arg5[%c0_32, %c0_33] : memref<40x128xbf16, #tpu.memory_space<vmem>>, vector<40x128xbf16>
    %cst_34 = arith.constant dense<0.000000e+00> : vector<64x128xf32>
    %33 = tpu.matmul %31, %32, %cst_34 {dimension_numbers = #tpu.dot_dimension_numbers<[1], [0], [0], [1], [0, 0, 1, 1], [], []>} : vector<64x40xbf16>, vector<40x128xbf16>, vector<64x128xf32> -> vector<64x128xf32>
    %34 = arith.maximumf %30, %33 : vector<64x128xf32>
    %c0_35 = arith.constant 0 : index
    %c72 = arith.constant 72 : index
    %35 = vector.load %arg2[%c0_35, %c72] : memref<64x128xbf16, #tpu.memory_space<vmem>>, vector<64x40xbf16>
    %c0_36 = arith.constant 0 : index
    %c0_37 = arith.constant 0 : index
    %36 = vector.load %arg5[%c0_36, %c0_37] : memref<40x128xbf16, #tpu.memory_space<vmem>>, vector<40x128xbf16>
    %cst_38 = arith.constant dense<0.000000e+00> : vector<64x128xf32>
    %37 = tpu.matmul %35, %36, %cst_38 {dimension_numbers = #tpu.dot_dimension_numbers<[1], [0], [0], [1], [0, 0, 1, 1], [], []>} : vector<64x40xbf16>, vector<40x128xbf16>, vector<64x128xf32> -> vector<64x128xf32>
    %38 = arith.maximumf %34, %37 : vector<64x128xf32>
    %c0_39 = arith.constant 0 : index
    %c80 = arith.constant 80 : index
    %39 = vector.load %arg2[%c0_39, %c80] : memref<64x128xbf16, #tpu.memory_space<vmem>>, vector<64x40xbf16>
    %c0_40 = arith.constant 0 : index
    %c0_41 = arith.constant 0 : index
    %40 = vector.load %arg5[%c0_40, %c0_41] : memref<40x128xbf16, #tpu.memory_space<vmem>>, vector<40x128xbf16>
    %cst_42 = arith.constant dense<0.000000e+00> : vector<64x128xf32>
    %41 = tpu.matmul %39, %40, %cst_42 {dimension_numbers = #tpu.dot_dimension_numbers<[1], [0], [0], [1], [0, 0, 1, 1], [], []>} : vector<64x40xbf16>, vector<40x128xbf16>, vector<64x128xf32> -> vector<64x128xf32>
    %42 = arith.maximumf %38, %41 : vector<64x128xf32>
    %c0_43 = arith.constant 0 : index
    %c88 = arith.constant 88 : index
    %43 = vector.load %arg2[%c0_43, %c88] : memref<64x128xbf16, #tpu.memory_space<vmem>>, vector<64x40xbf16>
    %c0_44 = arith.constant 0 : index
    %c0_45 = arith.constant 0 : index
    %44 = vector.load %arg5[%c0_44, %c0_45] : memref<40x128xbf16, #tpu.memory_space<vmem>>, vector<40x128xbf16>
    %cst_46 = arith.constant dense<0.000000e+00> : vector<64x128xf32>
    %45 = tpu.matmul %43, %44, %cst_46 {dimension_numbers = #tpu.dot_dimension_numbers<[1], [0], [0], [1], [0, 0, 1, 1], [], []>} : vector<64x40xbf16>, vector<40x128xbf16>, vector<64x128xf32> -> vector<64x128xf32>
    %46 = arith.maximumf %42, %45 : vector<64x128xf32>
    %c0_47 = arith.constant 0 : index
    %c0_48 = arith.constant 0 : index
    %47 = vector.load %arg6[%c0_47, %c0_48] : memref<1x128xf32, #tpu.memory_space<vmem>>, vector<1x128xf32>
    %48 = vector.broadcast %47 : vector<1x128xf32> to vector<64x128xf32>
    %49 = arith.addf %46, %48 : vector<64x128xf32>
    %cst_49 = arith.constant 0.000000e+00 : f32
    %50 = vector.broadcast %cst_49 : f32 to vector<64x128xf32>
    %51 = arith.maximumf %49, %50 : vector<64x128xf32>
    %c0_50 = arith.constant 0 : index
    %c0_51 = arith.constant 0 : index
    %52 = vector.load %arg1[%c0_50, %c0_51] : memref<64x46xbf16, #tpu.memory_space<vmem>>, vector<64x46xbf16>
    %c0_52 = arith.constant 0 : index
    %c0_53 = arith.constant 0 : index
    %53 = vector.load %arg3[%c0_52, %c0_53] : memref<46x128xbf16, #tpu.memory_space<vmem>>, vector<46x128xbf16>
    %cst_54 = arith.constant dense<0.000000e+00> : vector<64x128xf32>
    %54 = tpu.matmul %52, %53, %cst_54 {dimension_numbers = #tpu.dot_dimension_numbers<[1], [0], [0], [1], [0, 0, 1, 1], [], []>} : vector<64x46xbf16>, vector<46x128xbf16>, vector<64x128xf32> -> vector<64x128xf32>
    %55 = arith.truncf %51 : vector<64x128xf32> to vector<64x128xbf16>
    %c0_55 = arith.constant 0 : index
    %c0_56 = arith.constant 0 : index
    %56 = vector.load %arg4[%c0_55, %c0_56] : memref<128x128xbf16, #tpu.memory_space<vmem>>, vector<128x128xbf16>
    %cst_57 = arith.constant dense<0.000000e+00> : vector<64x128xf32>
    %57 = tpu.matmul %55, %56, %cst_57 {dimension_numbers = #tpu.dot_dimension_numbers<[1], [0], [0], [1], [0, 0, 1, 1], [], []>} : vector<64x128xbf16>, vector<128x128xbf16>, vector<64x128xf32> -> vector<64x128xf32>
    %58 = arith.addf %54, %57 : vector<64x128xf32>
    %59 = arith.truncf %58 : vector<64x128xf32> to vector<64x128xbf16>
    %c0_58 = arith.constant 0 : index
    %c0_59 = arith.constant 0 : index
    %60 = vector.load %arg7[%c0_58, %c0_59] : memref<128x256xbf16, #tpu.memory_space<vmem>>, vector<128x256xbf16>
    %cst_60 = arith.constant dense<0.000000e+00> : vector<64x256xf32>
    %61 = tpu.matmul %59, %60, %cst_60 {dimension_numbers = #tpu.dot_dimension_numbers<[1], [0], [0], [1], [0, 0, 1, 1], [], []>} : vector<64x128xbf16>, vector<128x256xbf16>, vector<64x256xf32> -> vector<64x256xf32>
    %c0_61 = arith.constant 0 : index
    %c0_62 = arith.constant 0 : index
    %62 = vector.load %arg8[%c0_61, %c0_62] : memref<1x256xf32, #tpu.memory_space<vmem>>, vector<1x256xf32>
    %63 = vector.broadcast %62 : vector<1x256xf32> to vector<64x256xf32>
    %64 = arith.addf %61, %63 : vector<64x256xf32>
    %65 = vector.extract_strided_slice %64 {offsets = [0, 0], sizes = [64, 128], strides = [1, 1]} : vector<64x256xf32> to vector<64x128xf32>
    %66 = arith.negf %65 : vector<64x128xf32>
    %67 = math.exp %66 : vector<64x128xf32>
    %cst_63 = arith.constant 1.000000e+00 : f32
    %68 = vector.broadcast %cst_63 : f32 to vector<64x128xf32>
    %69 = arith.addf %68, %67 : vector<64x128xf32>
    %70 = arith.divf %68, %69 : vector<64x128xf32>
    %71 = vector.extract_strided_slice %64 {offsets = [0, 128], sizes = [64, 128], strides = [1, 1]} : vector<64x256xf32> to vector<64x128xf32>
    %cst_64 = arith.constant 0.000000e+00 : f32
    %72 = vector.broadcast %cst_64 : f32 to vector<64x128xf32>
    %73 = arith.maximumf %71, %72 : vector<64x128xf32>
    %74 = arith.subf %73, %58 : vector<64x128xf32>
    %75 = arith.mulf %70, %74 : vector<64x128xf32>
    %76 = arith.addf %58, %75 : vector<64x128xf32>
    %77 = arith.truncf %76 : vector<64x128xf32> to vector<64x128xbf16>
    %c0_65 = arith.constant 0 : index
    %c0_66 = arith.constant 0 : index
    %78 = vector.load %arg9[%c0_65, %c0_66] : memref<128x256xbf16, #tpu.memory_space<vmem>>, vector<128x256xbf16>
    %cst_67 = arith.constant dense<0.000000e+00> : vector<64x256xf32>
    %79 = tpu.matmul %77, %78, %cst_67 {dimension_numbers = #tpu.dot_dimension_numbers<[1], [0], [0], [1], [0, 0, 1, 1], [], []>} : vector<64x128xbf16>, vector<128x256xbf16>, vector<64x256xf32> -> vector<64x256xf32>
    %c0_68 = arith.constant 0 : index
    %c0_69 = arith.constant 0 : index
    %80 = vector.load %arg10[%c0_68, %c0_69] : memref<1x256xf32, #tpu.memory_space<vmem>>, vector<1x256xf32>
    %81 = vector.broadcast %80 : vector<1x256xf32> to vector<64x256xf32>
    %82 = arith.addf %79, %81 : vector<64x256xf32>
    %83 = vector.extract_strided_slice %82 {offsets = [0, 0], sizes = [64, 128], strides = [1, 1]} : vector<64x256xf32> to vector<64x128xf32>
    %84 = arith.negf %83 : vector<64x128xf32>
    %85 = math.exp %84 : vector<64x128xf32>
    %cst_70 = arith.constant 1.000000e+00 : f32
    %86 = vector.broadcast %cst_70 : f32 to vector<64x128xf32>
    %87 = arith.addf %86, %85 : vector<64x128xf32>
    %88 = arith.divf %86, %87 : vector<64x128xf32>
    %89 = vector.extract_strided_slice %82 {offsets = [0, 128], sizes = [64, 128], strides = [1, 1]} : vector<64x256xf32> to vector<64x128xf32>
    %cst_71 = arith.constant 0.000000e+00 : f32
    %90 = vector.broadcast %cst_71 : f32 to vector<64x128xf32>
    %91 = arith.maximumf %89, %90 : vector<64x128xf32>
    %92 = arith.subf %91, %76 : vector<64x128xf32>
    %93 = arith.mulf %88, %92 : vector<64x128xf32>
    %94 = arith.addf %76, %93 : vector<64x128xf32>
    %c0_72 = arith.constant 0 : index
    %c0_73 = arith.constant 0 : index
    %95 = vector.load %arg11[%c0_72, %c0_73] : memref<64x128xf32, #tpu.memory_space<vmem>>, vector<64x128xf32>
    tpu.vector_store %arg11[%c0_72, %c0_73], %94 {strides = array<i32>} : memref<64x128xf32, #tpu.memory_space<vmem>>, vector<64x128xf32>,
    return
  }
  func.func @transform_0(%arg0: i32) -> (i32, i32) {
    %c0_i32 = arith.constant 0 : i32
    %c0_i32_0 = arith.constant 0 : i32
    return %arg0, %c0_i32 : i32, i32
  }
  func.func @transform_1(%arg0: i32) -> (i32, i32) {
    %c0_i32 = arith.constant 0 : i32
    %c0_i32_0 = arith.constant 0 : i32
    return %arg0, %c0_i32 : i32, i32
  }
  func.func @transform_2(%arg0: i32) -> (i32, i32) {
    %c0_i32 = arith.constant 0 : i32
    %c0_i32_0 = arith.constant 0 : i32
    %c0_i32_1 = arith.constant 0 : i32
    return %c0_i32, %c0_i32_0 : i32, i32
  }
  func.func @transform_3(%arg0: i32) -> (i32, i32) {
    %c0_i32 = arith.constant 0 : i32
    %c0_i32_0 = arith.constant 0 : i32
    %c0_i32_1 = arith.constant 0 : i32
    return %c0_i32, %c0_i32_0 : i32, i32
  }
  func.func @transform_4(%arg0: i32) -> (i32, i32) {
    %c0_i32 = arith.constant 0 : i32
    %c0_i32_0 = arith.constant 0 : i32
    %c0_i32_1 = arith.constant 0 : i32
    return %c0_i32, %c0_i32_0 : i32, i32
  }
  func.func @transform_5(%arg0: i32) -> (i32, i32) {
    %c0_i32 = arith.constant 0 : i32
    %c0_i32_0 = arith.constant 0 : i32
    %c0_i32_1 = arith.constant 0 : i32
    return %c0_i32, %c0_i32_0 : i32, i32
  }
  func.func @transform_6(%arg0: i32) -> (i32, i32) {
    %c0_i32 = arith.constant 0 : i32
    %c0_i32_0 = arith.constant 0 : i32
    %c0_i32_1 = arith.constant 0 : i32
    return %c0_i32, %c0_i32_0 : i32, i32
  }
  func.func @transform_7(%arg0: i32) -> (i32, i32) {
    %c0_i32 = arith.constant 0 : i32
    %c0_i32_0 = arith.constant 0 : i32
    %c0_i32_1 = arith.constant 0 : i32
    return %c0_i32, %c0_i32_0 : i32, i32
  }
  func.func @transform_8(%arg0: i32) -> (i32, i32) {
    %c0_i32 = arith.constant 0 : i32
    %c0_i32_0 = arith.constant 0 : i32
    %c0_i32_1 = arith.constant 0 : i32
    return %c0_i32, %c0_i32_0 : i32, i32
  }
  func.func @transform_9(%arg0: i32) -> (i32, i32) {
    %c0_i32 = arith.constant 0 : i32
    %c0_i32_0 = arith.constant 0 : i32
    %c0_i32_1 = arith.constant 0 : i32
    return %c0_i32, %c0_i32_0 : i32, i32
  }
  func.func @transform_10(%arg0: i32) -> (i32, i32) {
    %c0_i32 = arith.constant 0 : i32
    %c0_i32_0 = arith.constant 0 : i32
    return %arg0, %c0_i32 : i32, i32
  }
}

</mosaic_0001>

<llo_original>
// kernel: embedding_tag_ext_forward.1
$region0: #{embedding_tag_ext_forward.1}
  #allocation0 [shape = 'u32[]', space=smem, size = 0x4, offset = 0x4, fixed_abs, tag = 'smem constant byte address 0x4 - core index']
  #allocation1 [shape = 'u32[144,128]{1,0:T(1,128)}', space=vmem, size = 0x12000, scoped, tag = 'internal scratch']
  %s0 = inlined_call_operand.vmem [shape: bf16[128,46], index: 0, kind: input, shape index: {}]
  %s1 = inlined_call_operand.vmem [shape: bf16[128,128], index: 1, kind: input, shape index: {}]
  %s2 = inlined_call_operand.vmem [shape: bf16[46,128], index: 2, kind: input, shape index: {}]
  %s3 = inlined_call_operand.vmem [shape: bf16[128,128], index: 3, kind: input, shape index: {}]
  %s4 = inlined_call_operand.vmem [shape: bf16[40,128], index: 4, kind: input, shape index: {}]
  %s5 = inlined_call_operand.vmem [shape: f32[1,128], index: 5, kind: input, shape index: {}]
  %s6 = inlined_call_operand.vmem [shape: bf16[128,256], index: 6, kind: input, shape index: {}]
  %s7 = inlined_call_operand.vmem [shape: f32[1,256], index: 7, kind: input, shape index: {}]
  %s8 = inlined_call_operand.vmem [shape: bf16[128,256], index: 8, kind: input, shape index: {}]
  %s9 = inlined_call_operand.vmem [shape: f32[1,256], index: 9, kind: input, shape index: {}]
  %s10 = inlined_call_operand.vmem [shape: f32[128,128], index: 10, kind: output, shape index: {}]
  %s11 = sld [smem:[#allocation0]]
  $region73: #{embedding_tag_ext_forward.1} parent=0
    _
  %s13 = ssub.s32 1, %s11
  %s14 = scalar_select 0, %s13, %s11
  loop: start=0, step=1, limit=4
  $region2: #{embedding_tag_ext_forward.1} parent=0 // loop_pre_header
    _
  $region3: #{embedding_tag_ext_forward.1} parent=0 // loop_header
    %s16 = sphi 0, %s20
    %p17 = scmp.ge.s32.totalorder %s16, 4
    %s26 = sphi 0, %s28
    %s29 = sphi 0, %s26
    %s30 = sphi 0, %s29
    %s46 = sphi 0, %s30
    %s52 = sphi 0, %s54
    %s55 = sphi 0, %s52
    %s56 = sphi 0, %s55
    %s72 = sphi 0, %s56
    %s76 = sphi 0, %s76
    %s78 = sphi 0, %s76
    %s79 = sphi 0, %s78
    %s93 = sphi 0, %s79
    %s97 = sphi 0, %s97
    %s99 = sphi 0, %s97
    %s100 = sphi 0, %s99
    %s114 = sphi 0, %s100
    %s118 = sphi 0, %s118
    %s120 = sphi 0, %s118
    %s121 = sphi 0, %s120
    %s135 = sphi 0, %s121
    %s139 = sphi 0, %s139
    %s141 = sphi 0, %s139
    %s142 = sphi 0, %s141
    %s156 = sphi 0, %s142
    %s160 = sphi 0, %s160
    %s162 = sphi 0, %s160
    %s163 = sphi 0, %s162
    %s177 = sphi 0, %s163
    %s181 = sphi 0, %s181
    %s183 = sphi 0, %s181
    %s184 = sphi 0, %s183
    %s198 = sphi 0, %s184
    %s202 = sphi 0, %s202
    %s204 = sphi 0, %s202
    %s205 = sphi 0, %s204
    %s219 = sphi 0, %s205
    %s223 = sphi 0, %s223
    %s225 = sphi 0, %s223
    %s226 = sphi 0, %s225
    %s240 = sphi 0, %s226
    %s246 = sphi 0, %s248
    %s249 = sphi 0, %s246
    %s250 = sphi 0, %s249
    %s266 = sphi 0, %s250
  $region4: #{embedding_tag_ext_forward.1} parent=0 // loop_header_branch
    %19 = sbr.rel (%p17) target = $region8
  $region5: #{embedding_tag_ext_forward.1} parent=0 // loop_body
    %s21 = ssub.s32 %s16, 1
    %s22 = ssub.s32 %s16, 2
    %s23 = sadd.s32 %s16, 1
    %s24 = ssub.s32 %s16, %s23
    %p25 = scmp.eq.s32.totalorder %s24, 0
    %s27 = sadd.s32 %s26, 1
    %s28 = scalar_select %p25, %s26, %s27
    %p31 = pneg %p25
    %p32 = scmp.eq.s32.totalorder %s16, 1
    %p33 = por %p31, %p32
    %p34 = scmp.ne.s32.totalorder %s26, %s29
    %p35 = scmp.eq.s32.totalorder %s16, 0
    %p36 = por %p34, %p35
    %p37 = scmp.ne.s32.totalorder %s26, %s29
    %p38 = scmp.eq.s32.totalorder %s21, 1
    %p39 = por %p37, %p38
    %p40 = scmp.ne.s32.totalorder %s29, %s30
    %p41 = scmp.eq.s32.totalorder %s21, 0
    %p42 = por %p40, %p41
    %p43 = scmp.ne.s32.totalorder %s29, %s30
    %p44 = scmp.eq.s32.totalorder %s22, 1
    %p45 = por %p43, %p44
    %p47 = scmp.ne.s32.totalorder %s30, %s46
    %p48 = scmp.eq.s32.totalorder %s22, 0
    %p49 = por %p47, %p48
    %s50 = ssub.s32 %s16, %s23
    %p51 = scmp.eq.s32.totalorder %s50, 0
    %s53 = sadd.s32 %s52, 1
    %s54 = scalar_select %p51, %s52, %s53
    %p57 = pneg %p51
    %p58 = scmp.eq.s32.totalorder %s16, 1
    %p59 = por %p57, %p58
    %p60 = scmp.ne.s32.totalorder %s52, %s55
    %p61 = scmp.eq.s32.totalorder %s16, 0
    %p62 = por %p60, %p61
    %p63 = scmp.ne.s32.totalorder %s52, %s55
    %p64 = scmp.eq.s32.totalorder %s21, 1
    %p65 = por %p63, %p64
    %p66 = scmp.ne.s32.totalorder %s55, %s56
    %p67 = scmp.eq.s32.totalorder %s21, 0
    %p68 = por %p66, %p67
    %p69 = scmp.ne.s32.totalorder %s55, %s56
    %p70 = scmp.eq.s32.totalorder %s22, 1
    %p71 = por %p69, %p70
    %p73 = scmp.ne.s32.totalorder %s56, %s72
    %p74 = scmp.eq.s32.totalorder %s22, 0
    %p75 = por %p73, %p74
    %s77 = sadd.s32 %s76, 1
    %p80 = scmp.eq.s32.totalorder %s16, 1
    %p81 = scmp.ne.s32.totalorder %s76, %s78
    %p82 = scmp.eq.s32.totalorder %s16, 0
    %p83 = por %p81, %p82
    %p84 = scmp.ne.s32.totalorder %s76, %s78
    %p85 = scmp.eq.s32.totalorder %s21, 1
    %p86 = por %p84, %p85
    %p87 = scmp.ne.s32.totalorder %s78, %s79
    %p88 = scmp.eq.s32.totalorder %s21, 0
    %p89 = por %p87, %p88
    %p90 = scmp.ne.s32.totalorder %s78, %s79
    %p91 = scmp.eq.s32.totalorder %s22, 1
    %p92 = por %p90, %p91
    %p94 = scmp.ne.s32.totalorder %s79, %s93
    %p95 = scmp.eq.s32.totalorder %s22, 0
    %p96 = por %p94, %p95
    %s98 = sadd.s32 %s97, 1
    %p101 = scmp.eq.s32.totalorder %s16, 1
    %p102 = scmp.ne.s32.totalorder %s97, %s99
    %p103 = scmp.eq.s32.totalorder %s16, 0
    %p104 = por %p102, %p103
    %p105 = scmp.ne.s32.totalorder %s97, %s99
    %p106 = scmp.eq.s32.totalorder %s21, 1
    %p107 = por %p105, %p106
    %p108 = scmp.ne.s32.totalorder %s99, %s100
    %p109 = scmp.eq.s32.totalorder %s21, 0
    %p110 = por %p108, %p109
    %p111 = scmp.ne.s32.totalorder %s99, %s100
    %p112 = scmp.eq.s32.totalorder %s22, 1
    %p113 = por %p111, %p112
    %p115 = scmp.ne.s32.totalorder %s100, %s114
    %p116 = scmp.eq.s32.totalorder %s22, 0
    %p117 = por %p115, %p116
    %s119 = sadd.s32 %s118, 1
    %p122 = scmp.eq.s32.totalorder %s16, 1
    %p123 = scmp.ne.s32.totalorder %s118, %s120
    %p124 = scmp.eq.s32.totalorder %s16, 0
    %p125 = por %p123, %p124
    %p126 = scmp.ne.s32.totalorder %s118, %s120
    %p127 = scmp.eq.s32.totalorder %s21, 1
    %p128 = por %p126, %p127
    %p129 = scmp.ne.s32.totalorder %s120, %s121
    %p130 = scmp.eq.s32.totalorder %s21, 0
    %p131 = por %p129, %p130
    %p132 = scmp.ne.s32.totalorder %s120, %s121
    %p133 = scmp.eq.s32.totalorder %s22, 1
    %p134 = por %p132, %p133
    %p136 = scmp.ne.s32.totalorder %s121, %s135
    %p137 = scmp.eq.s32.totalorder %s22, 0
    %p138 = por %p136, %p137
    %s140 = sadd.s32 %s139, 1
    %p143 = scmp.eq.s32.totalorder %s16, 1
    %p144 = scmp.ne.s32.totalorder %s139, %s141
    %p145 = scmp.eq.s32.totalorder %s16, 0
    %p146 = por %p144, %p145
    %p147 = scmp.ne.s32.totalorder %s139, %s141
    %p148 = scmp.eq.s32.totalorder %s21, 1
    %p149 = por %p147, %p148
    %p150 = scmp.ne.s32.totalorder %s141, %s142
    %p151 = scmp.eq.s32.totalorder %s21, 0
    %p152 = por %p150, %p151
    %p153 = scmp.ne.s32.totalorder %s141, %s142
    %p154 = scmp.eq.s32.totalorder %s22, 1
    %p155 = por %p153, %p154
    %p157 = scmp.ne.s32.totalorder %s142, %s156
    %p158 = scmp.eq.s32.totalorder %s22, 0
    %p159 = por %p157, %p158
    %s161 = sadd.s32 %s160, 1
    %p164 = scmp.eq.s32.totalorder %s16, 1
    %p165 = scmp.ne.s32.totalorder %s160, %s162
    %p166 = scmp.eq.s32.totalorder %s16, 0
    %p167 = por %p165, %p166
    %p168 = scmp.ne.s32.totalorder %s160, %s162
    %p169 = scmp.eq.s32.totalorder %s21, 1
    %p170 = por %p168, %p169
    %p171 = scmp.ne.s32.totalorder %s162, %s163
    %p172 = scmp.eq.s32.totalorder %s21, 0
    %p173 = por %p171, %p172
    %p174 = scmp.ne.s32.totalorder %s162, %s163
    %p175 = scmp.eq.s32.totalorder %s22, 1
    %p176 = por %p174, %p175
    %p178 = scmp.ne.s32.totalorder %s163, %s177
    %p179 = scmp.eq.s32.totalorder %s22, 0
    %p180 = por %p178, %p179
    %s182 = sadd.s32 %s181, 1
    %p185 = scmp.eq.s32.totalorder %s16, 1
    %p186 = scmp.ne.s32.totalorder %s181, %s183
    %p187 = scmp.eq.s32.totalorder %s16, 0
    %p188 = por %p186, %p187
    %p189 = scmp.ne.s32.totalorder %s181, %s183
    %p190 = scmp.eq.s32.totalorder %s21, 1
    %p191 = por %p189, %p190
    %p192 = scmp.ne.s32.totalorder %s183, %s184
    %p193 = scmp.eq.s32.totalorder %s21, 0
    %p194 = por %p192, %p193
    %p195 = scmp.ne.s32.totalorder %s183, %s184
    %p196 = scmp.eq.s32.totalorder %s22, 1
    %p197 = por %p195, %p196
    %p199 = scmp.ne.s32.totalorder %s184, %s198
    %p200 = scmp.eq.s32.totalorder %s22, 0
    %p201 = por %p199, %p200
    %s203 = sadd.s32 %s202, 1
    %p206 = scmp.eq.s32.totalorder %s16, 1
    %p207 = scmp.ne.s32.totalorder %s202, %s204
    %p208 = scmp.eq.s32.totalorder %s16, 0
    %p209 = por %p207, %p208
    %p210 = scmp.ne.s32.totalorder %s202, %s204
    %p211 = scmp.eq.s32.totalorder %s21, 1
    %p212 = por %p210, %p211
    %p213 = scmp.ne.s32.totalorder %s204, %s205
    %p214 = scmp.eq.s32.totalorder %s21, 0
    %p215 = por %p213, %p214
    %p216 = scmp.ne.s32.totalorder %s204, %s205
    %p217 = scmp.eq.s32.totalorder %s22, 1
    %p218 = por %p216, %p217
    %p220 = scmp.ne.s32.totalorder %s205, %s219
    %p221 = scmp.eq.s32.totalorder %s22, 0
    %p222 = por %p220, %p221
    %s224 = sadd.s32 %s223, 1
    %p227 = scmp.eq.s32.totalorder %s16, 1
    %p228 = scmp.ne.s32.totalorder %s223, %s225
    %p229 = scmp.eq.s32.totalorder %s16, 0
    %p230 = por %p228, %p229
    %p231 = scmp.ne.s32.totalorder %s223, %s225
    %p232 = scmp.eq.s32.totalorder %s21, 1
    %p233 = por %p231, %p232
    %p234 = scmp.ne.s32.totalorder %s225, %s226
    %p235 = scmp.eq.s32.totalorder %s21, 0
    %p236 = por %p234, %p235
    %p237 = scmp.ne.s32.totalorder %s225, %s226
    %p238 = scmp.eq.s32.totalorder %s22, 1
    %p239 = por %p237, %p238
    %p241 = scmp.ne.s32.totalorder %s226, %s240
    %p242 = scmp.eq.s32.totalorder %s22, 0
    %p243 = por %p241, %p242
    %s244 = ssub.s32 %s16, %s23
    %p245 = scmp.eq.s32.totalorder %s244, 0
    %s247 = sadd.s32 %s246, 1
    %s248 = scalar_select %p245, %s246, %s247
    %p251 = pneg %p245
    %p252 = scmp.eq.s32.totalorder %s16, 1
    %p253 = por %p251, %p252
    %p254 = scmp.ne.s32.totalorder %s246, %s249
    %p255 = scmp.eq.s32.totalorder %s16, 0
    %p256 = por %p254, %p255
    %p257 = scmp.ne.s32.totalorder %s246, %s249
    %p258 = scmp.eq.s32.totalorder %s21, 1
    %p259 = por %p257, %p258
    %p260 = scmp.ne.s32.totalorder %s249, %s250
    %p261 = scmp.eq.s32.totalorder %s21, 0
    %p262 = por %p260, %p261
    %p263 = scmp.ne.s32.totalorder %s249, %s250
    %p264 = scmp.eq.s32.totalorder %s22, 1
    %p265 = por %p263, %p264
    %p267 = scmp.ne.s32.totalorder %s250, %s266
    %p268 = scmp.eq.s32.totalorder %s22, 0
    %p269 = por %p267, %p268
    %p270 = scmp.le.s32.totalorder 1, %s16
    %p271 = scmp.lt.s32.totalorder %s16, 3
    %p272 = pnand %p270, %p271
    %p273 = pneg %p272
    // Predicated region
    $region9: #{embedding_tag_ext_forward.1} parent=5 // pred_check
      _
    $region10: #{embedding_tag_ext_forward.1} parent=5 // pred_check_branch
      %275 = sbr.rel (%p272) target = $region12
    $region11: #{embedding_tag_ext_forward.1} parent=5 // pred_region
      %s276 = ssub.s32 %s16, 1
      // Predicated region
      $region13: #{embedding_tag_ext_forward.1} parent=11 // pred_check
        %p277 = pneg %p89
      $region14: #{embedding_tag_ext_forward.1} parent=11 // pred_check_branch
        %279 = sbr.rel (%p277) target = $region16
      $region15: #{embedding_tag_ext_forward.1} parent=11 // pred_region
        _
      $region16: #{embedding_tag_ext_forward.1} parent=11 // pred_fallthru
        _
      // Predicated region
      $region17: #{embedding_tag_ext_forward.1} parent=11 // pred_check
        %p280 = pneg %p110
      $region18: #{embedding_tag_ext_forward.1} parent=11 // pred_check_branch
        %282 = sbr.rel (%p280) target = $region20
      $region19: #{embedding_tag_ext_forward.1} parent=11 // pred_region
        _
      $region20: #{embedding_tag_ext_forward.1} parent=11 // pred_fallthru
        _
      // Predicated region
      $region21: #{embedding_tag_ext_forward.1} parent=11 // pred_check
        %p283 = pneg %p131
      $region22: #{embedding_tag_ext_forward.1} parent=11 // pred_check_branch
        %285 = sbr.rel (%p283) target = $region24
      $region23: #{embedding_tag_ext_forward.1} parent=11 // pred_region
        _
      $region24: #{embedding_tag_ext_forward.1} parent=11 // pred_fallthru
        _
      // Predicated region
      $region25: #{embedding_tag_ext_forward.1} parent=11 // pred_check
        %p286 = pneg %p152
      $region26: #{embedding_tag_ext_forward.1} parent=11 // pred_check_branch
        %288 = sbr.rel (%p286) target = $region28
      $region27: #{embedding_tag_ext_forward.1} parent=11 // pred_region
        _
      $region28: #{embedding_tag_ext_forward.1} parent=11 // pred_fallthru
        _
      // Predicated region
      $region29: #{embedding_tag_ext_forward.1} parent=11 // pred_check
        %p289 = pneg %p173
      $region30: #{embedding_tag_ext_forward.1} parent=11 // pred_check_branch
        %291 = sbr.rel (%p289) target = $region32
      $region31: #{embedding_tag_ext_forward.1} parent=11 // pred_region
        _
      $region32: #{embedding_tag_ext_forward.1} parent=11 // pred_fallthru
        _
      // Predicated region
      $region33: #{embedding_tag_ext_forward.1} parent=11 // pred_check
        %p292 = pneg %p194
      $region34: #{embedding_tag_ext_forward.1} parent=11 // pred_check_branch
        %294 = sbr.rel (%p292) target = $region36
      $region35: #{embedding_tag_ext_forward.1} parent=11 // pred_region
        _
      $region36: #{embedding_tag_ext_forward.1} parent=11 // pred_fallthru
        _
      // Predicated region
      $region37: #{embedding_tag_ext_forward.1} parent=11 // pred_check
        %p295 = pneg %p215
      $region38: #{embedding_tag_ext_forward.1} parent=11 // pred_check_branch
        %297 = sbr.rel (%p295) target = $region40
      $region39: #{embedding_tag_ext_forward.1} parent=11 // pred_region
        _
      $region40: #{embedding_tag_ext_forward.1} parent=11 // pred_fallthru
        _
      // Predicated region
      $region41: #{embedding_tag_ext_forward.1} parent=11 // pred_check
        %p298 = pneg %p236
      $region42: #{embedding_tag_ext_forward.1} parent=11 // pred_check_branch
        %300 = sbr.rel (%p298) target = $region44
      $region43: #{embedding_tag_ext_forward.1} parent=11 // pred_region
        _
      $region44: #{embedding_tag_ext_forward.1} parent=11 // pred_fallthru
        _
    $region12: #{embedding_tag_ext_forward.1} parent=5 // pred_fallthru
      _
    %p301 = scmp.lt.s32.totalorder %s16, 2
    // Predicated region
    $region45: #{embedding_tag_ext_forward.1} parent=5 // pred_check
      %p302 = pneg %p301
    $region46: #{embedding_tag_ext_forward.1} parent=5 // pred_check_branch
      %304 = sbr.rel (%p302) target = $region48
    $region47: #{embedding_tag_ext_forward.1} parent=5 // pred_region
      // Predicated region
      $region49: #{embedding_tag_ext_forward.1} parent=47 // pred_check
        %p305 = pneg %p36
      $region50: #{embedding_tag_ext_forward.1} parent=47 // pred_check_branch
        %307 = sbr.rel (%p305) target = $region52
      $region51: #{embedding_tag_ext_forward.1} parent=47 // pred_region
        %s308 = smul.u32 8, %s16
        %p309 = scmp.lt.s32.totalorder %s308, 15
        %s310 = scalar_select %p309, %s308, 15
        %s311 = smul.addr %s310, 4
        %s312 = scalar_lea.vmem %s0, %s311
        %s313 = smul.u32 8, %s16
      $region52: #{embedding_tag_ext_forward.1} parent=47 // pred_fallthru
        _
      // Predicated region
      $region53: #{embedding_tag_ext_forward.1} parent=47 // pred_check
        %p314 = pneg %p62
      $region54: #{embedding_tag_ext_forward.1} parent=47 // pred_check_branch
        %316 = sbr.rel (%p314) target = $region56
      $region55: #{embedding_tag_ext_forward.1} parent=47 // pred_region
        %s317 = smul.u32 8, %s16
        %p318 = scmp.lt.s32.totalorder %s317, 15
        %s319 = scalar_select %p318, %s317, 15
        %s320 = smul.addr %s319, 4
        %s321 = scalar_lea.vmem %s1, %s320
        %s322 = smul.u32 8, %s16
      $region56: #{embedding_tag_ext_forward.1} parent=47 // pred_fallthru
        _
    $region48: #{embedding_tag_ext_forward.1} parent=5 // pred_fallthru
      _
    %p323 = scmp.le.s32.totalorder 1, %s16
    %p324 = scmp.lt.s32.totalorder %s16, 3
    %p325 = pnand %p323, %p324
    %p326 = pneg %p325
    // Predicated region
    $region57: #{embedding_tag_ext_forward.1} parent=5 // pred_check
      _
    $region58: #{embedding_tag_ext_forward.1} parent=5 // pred_check_branch
      %328 = sbr.rel (%p325) target = $region60
    $region59: #{embedding_tag_ext_forward.1} parent=5 // pred_region
      %s329 = ssub.s32 %s16, 1
      %s330 = smul.u32 8, %s21
      %p331 = scmp.lt.s32.totalorder %s330, 15
      %s332 = scalar_select %p331, %s330, 15
      %s333 = smul.addr %s332, 4
      %s334 = scalar_lea.vmem %s0, %s333
      %p335 = pneg %p42
      %p336 = pneg %p39
      %s337 = smul.u32 8, %s21
      %p338 = scmp.lt.s32.totalorder %s337, 15
      %s339 = scalar_select %p338, %s337, 15
      %s340 = smul.addr %s339, 4
      %s341 = scalar_lea.vmem %s1, %s340
      %p342 = pneg %p68
      %p343 = pneg %p65
      %p344 = pneg %p89
      %p345 = pneg %p86
      %p346 = pneg %p110
      %p347 = pneg %p107
      %p348 = pneg %p131
      %p349 = pneg %p128
      %p350 = pneg %p152
      %p351 = pneg %p149
      %p352 = pneg %p173
      %p353 = pneg %p170
      %p354 = pneg %p194
      %p355 = pneg %p191
      %p356 = pneg %p215
      %p357 = pneg %p212
      %p358 = pneg %p236
      %p359 = pneg %p233
      %p360 = pneg %p262
      %p361 = pneg %p259
      %s362 = smul.u32 8, %s21
      %p363 = scmp.lt.s32.totalorder %s362, 15
      %s364 = scalar_select %p363, %s362, 15
      %s365 = smul.addr %s364, 8
      %s366 = scalar_lea.vmem %s10, %s365
      %s367 = smul.u32 8, %s21
      %p368 = scmp.lt.s32.totalorder %s367, 15
      %s369 = scalar_select %p368, %s367, 15
      %s370 = smul.addr %s369, 4
      %s371 = scalar_lea.vmem %s0, %s370
      %s372 = smul.u32 8, %s21
      %s373 = smul.u32 8, %s21
      %p374 = scmp.lt.s32.totalorder %s373, 15
      %s375 = scalar_select %p374, %s373, 15
      %s376 = smul.addr %s375, 4
      %s377 = scalar_lea.vmem %s1, %s376
      %s378 = smul.u32 8, %s21
      %s379 = smul.u32 8, %s21
      %p380 = scmp.lt.s32.totalorder %s379, 15
      %s381 = scalar_select %p380, %s379, 15
      %s382 = smul.addr %s381, 8
      %s383 = scalar_lea.vmem %s10, %s382
      %s384 = smul.u32 8, %s21
      %v386 = vld [vmem:[%s377] sm:$0xf]
      %v387 = vld [vmem:[%s377 + $0x4] sm:$0xf]
      %v388 = vld [vmem:[%s377 + $0x8] sm:$0xf]
      %v389 = vld [vmem:[%s377 + $0xc] sm:$0xf]
      %v390 = vld [vmem:[%s377 + $0x10] sm:$0xf]
      %v391 = vld [vmem:[%s377 + $0x14] sm:$0xf]
      %v392 = vld [vmem:[%s377 + $0x18] sm:$0xf]
      %v393 = vld [vmem:[%s377 + $0x1c] sm:$0xf]
      %v394 = vld [vmem:[%s4] sm:$0xf]
      %v395 = vld [vmem:[%s4 + $0x4] sm:$0xf]
      %v396 = vld [vmem:[%s4 + $0x8] sm:$0xf]
      %v397 = vld [vmem:[%s4 + $0xc] sm:$0xf]
      %v398 = vld [vmem:[%s4 + $0x10] sm:$0xf]
      %v407 = vunpack.c.l.b16 %v386
      %v408 = vunpack.c.l.b16 %v387
      %v409 = vunpack.c.l.b16 %v388
      %v410 = vunpack.c.l.b16 %v389
      %v411 = vunpack.c.l.b16 %v390
      %v412 = vunpack.c.l.b16 %v391
      %v413 = vunpack.c.l.b16 %v392
      %v414 = vunpack.c.l.b16 %v393
      %v415 = vpack.c.b16 %v408, %v407
      %v416 = vpack.c.b16 %v410, %v409
      %v417 = vpack.c.b16 %v412, %v411
      %v418 = vpack.c.b16 %v414, %v413
      %v424 = vunpack.c.l.b16 %v394
      %v425 = vunpack.c.l.b16 %v395
      %v426 = vunpack.c.l.b16 %v396
      %v427 = vunpack.c.l.b16 %v397
      %v428 = vunpack.c.l.b16 %v398
      %v429 = vpack.c.b16 %v425, %v424
      %v430 = vpack.c.b16 %v427, %v426
      %v431 = vpack.c.b16 %v428, %v428
      %vm434 = vcmask 326656
      %v436 = vsel %vm434, %v415, 0
      %v439 = vsel %vm434, %v416, 0
      %v442 = vsel %vm434, %v417, 0
      %v445 = vsel %vm434, %v418, 0
      %vm447 = vcmask 1043456
      %v449 = vsel %vm447, %v431, 0
      %451 = vmatprep.subr.bf16.mxu0 0
      %452 = vmatpush1.bf16.msra.mxu0 %v429
      %453 = vmatprep.subr.bf16.mxu0 0
      %454 = vmatpush1.bf16.msra.mxu0 %v430
      %455 = vmatprep.subr.bf16.mxu0 0
      %456 = vmatpush1.bf16.msra.mxu0 %v449
      %457 = vmatprep.subr.bf16.mxu0 0
      %458 = vmatpush1.bf16.msra.mxu0 0
      %459 = vmatprep.subr.bf16.mxu0 0
      %460 = vmatpush1.bf16.msra.mxu0 0
      %461 = vmatprep.subr.bf16.mxu0 0
      %462 = vmatpush1.bf16.msra.mxu0 0
      %463 = vmatprep.subr.bf16.mxu0 0
      %464 = vmatpush1.bf16.msra.mxu0 0
      %465 = vmatprep.subr.bf16.mxu0 0
      %466 = vmatpush1.bf16.msra.mxu0 0
      %467 = vmatprep.subr.bf16.mxu0 0
      %468 = vmatpush1.bf16.msra.mxu0 0
      %469 = vmatprep.subr.bf16.mxu0 0
      %470 = vmatpush1.bf16.msra.mxu0 0
      %471 = vmatprep.subr.bf16.mxu0 0
      %472 = vmatpush1.bf16.msra.mxu0 0
      %473 = vmatprep.subr.bf16.mxu0 0
      %474 = vmatpush1.bf16.msra.mxu0 0
      %475 = vmatprep.subr.bf16.mxu0 0
      %476 = vmatpush1.bf16.msra.mxu0 0
      %477 = vmatprep.subr.bf16.mxu0 0
      %478 = vmatpush1.bf16.msra.mxu0 0
      %479 = vmatprep.subr.bf16.mxu0 0
      %480 = vmatpush1.bf16.msra.mxu0 0
      %481 = vmatprep.subr.bf16.mxu0 0
      %482 = vmatpush1.bf16.msra.mxu0 0
      %483 = vmatprep.mubr.bf16.mxu0 0
      %484 = vmatmul.mubr.bf16.gmra.mrb[0].mxu0 %v436
      %v485 = vpop.f32.mrb[0].mxu0
      %v486 = vadd.f32 0.0, %v485
      %v487 = vpop.f32.mrb[0].mxu0
      %v488 = vpop.f32.mrb[0].mxu0
      %v489 = vadd.f32 0.0, %v488
      %v490 = vpop.f32.mrb[0].mxu0
      %491 = vmatprep.mubr.bf16.mxu0 0
      %492 = vmatmul.mubr.bf16.gmra.mrb[0].mxu0 %v439
      %v493 = vpop.f32.mrb[0].mxu0
      %v494 = vadd.f32 0.0, %v493
      %v495 = vpop.f32.mrb[0].mxu0
      %v496 = vpop.f32.mrb[0].mxu0
      %v497 = vadd.f32 0.0, %v496
      %v498 = vpop.f32.mrb[0].mxu0
      %499 = vmatprep.mubr.bf16.mxu0 0
      %500 = vmatmul.mubr.bf16.gmra.mrb[0].mxu0 %v442
      %v501 = vpop.f32.mrb[0].mxu0
      %v502 = vadd.f32 0.0, %v501
      %v503 = vpop.f32.mrb[0].mxu0
      %v504 = vpop.f32.mrb[0].mxu0
      %v505 = vadd.f32 0.0, %v504
      %v506 = vpop.f32.mrb[0].mxu0
      %507 = vmatprep.mubr.bf16.mxu0 0
      %508 = vmatmul.mubr.bf16.gmra.mrb[0].mxu0 %v445
      %v509 = vpop.f32.mrb[0].mxu0
      %v510 = vadd.f32 0.0, %v509
      %v511 = vpop.f32.mrb[0].mxu0
      %v512 = vpop.f32.mrb[0].mxu0
      %v513 = vadd.f32 0.0, %v512
      %v514 = vpop.f32.mrb[0].mxu0
      %515 = vdwg.mxu0
      %516 = vrot.lane.b32.xlu0 %v415, 120
      %v517 = vpop.permute.xlu0 %516
      %518 = vrot.lane.b32.xlu0 %v416, 120
      %v519 = vpop.permute.xlu0 %518
      %520 = vrot.lane.b32.xlu0 %v417, 120
      %v521 = vpop.permute.xlu0 %520
      %522 = vrot.lane.b32.xlu0 %v418, 120
      %v523 = vpop.permute.xlu0 %522
      %v525 = vsel %vm434, %v517, 0
      %v528 = vsel %vm434, %v519, 0
      %v531 = vsel %vm434, %v521, 0
      %v534 = vsel %vm434, %v523, 0
      %536 = vmatprep.subr.bf16.mxu0 0
      %537 = vmatpush1.bf16.msra.mxu0 %v429
      %538 = vmatprep.subr.bf16.mxu0 0
      %539 = vmatpush1.bf16.msra.mxu0 %v430
      %540 = vmatprep.subr.bf16.mxu0 0
      %541 = vmatpush1.bf16.msra.mxu0 %v449
      %542 = vmatprep.subr.bf16.mxu0 0
      %543 = vmatpush1.bf16.msra.mxu0 0
      %544 = vmatprep.subr.bf16.mxu0 0
      %545 = vmatpush1.bf16.msra.mxu0 0
      %546 = vmatprep.subr.bf16.mxu0 0
      %547 = vmatpush1.bf16.msra.mxu0 0
      %548 = vmatprep.subr.bf16.mxu0 0
      %549 = vmatpush1.bf16.msra.mxu0 0
      %550 = vmatprep.subr.bf16.mxu0 0
      %551 = vmatpush1.bf16.msra.mxu0 0
      %552 = vmatprep.subr.bf16.mxu0 0
      %553 = vmatpush1.bf16.msra.mxu0 0
      %554 = vmatprep.subr.bf16.mxu0 0
      %555 = vmatpush1.bf16.msra.mxu0 0
      %556 = vmatprep.subr.bf16.mxu0 0
      %557 = vmatpush1.bf16.msra.mxu0 0
      %558 = vmatprep.subr.bf16.mxu0 0
      %559 = vmatpush1.bf16.msra.mxu0 0
      %560 = vmatprep.subr.bf16.mxu0 0
      %561 = vmatpush1.bf16.msra.mxu0 0
      %562 = vmatprep.subr.bf16.mxu0 0
      %563 = vmatpush1.bf16.msra.mxu0 0
      %564 = vmatprep.subr.bf16.mxu0 0
      %565 = vmatpush1.bf16.msra.mxu0 0
      %566 = vmatprep.subr.bf16.mxu0 0
      %567 = vmatpush1.bf16.msra.mxu0 0
      %568 = vmatprep.mubr.bf16.mxu0 0
      %569 = vmatmul.mubr.bf16.gmra.mrb[0].mxu0 %v525
      %v570 = vpop.f32.mrb[0].mxu0
      %v571 = vadd.f32 0.0, %v570
      %v572 = vpop.f32.mrb[0].mxu0
      %v573 = vpop.f32.mrb[0].mxu0
      %v574 = vadd.f32 0.0, %v573
      %v575 = vpop.f32.mrb[0].mxu0
      %576 = vmatprep.mubr.bf16.mxu0 0
      %577 = vmatmul.mubr.bf16.gmra.mrb[0].mxu0 %v528
      %v578 = vpop.f32.mrb[0].mxu0
      %v579 = vadd.f32 0.0, %v578
      %v580 = vpop.f32.mrb[0].mxu0
      %v581 = vpop.f32.mrb[0].mxu0
      %v582 = vadd.f32 0.0, %v581
      %v583 = vpop.f32.mrb[0].mxu0
      %584 = vmatprep.mubr.bf16.mxu0 0
      %585 = vmatmul.mubr.bf16.gmra.mrb[0].mxu0 %v531
      %v586 = vpop.f32.mrb[0].mxu0
      %v587 = vadd.f32 0.0, %v586
      %v588 = vpop.f32.mrb[0].mxu0
      %v589 = vpop.f32.mrb[0].mxu0
      %v590 = vadd.f32 0.0, %v589
      %v591 = vpop.f32.mrb[0].mxu0
      %592 = vmatprep.mubr.bf16.mxu0 0
      %593 = vmatmul.mubr.bf16.gmra.mrb[0].mxu0 %v534
      %v594 = vpop.f32.mrb[0].mxu0
      %v595 = vadd.f32 0.0, %v594
      %v596 = vpop.f32.mrb[0].mxu0
      %v597 = vpop.f32.mrb[0].mxu0
      %v598 = vadd.f32 0.0, %v597
      %v599 = vpop.f32.mrb[0].mxu0
      %600 = vdwg.mxu0
      %v601 = vmax.f32 %v486, %v571
      %v602 = vmax.f32 %v489, %v574
      %v603 = vmax.f32 %v494, %v579
      %v604 = vmax.f32 %v497, %v582
      %v605 = vmax.f32 %v502, %v587
      %v606 = vmax.f32 %v505, %v590
      %v607 = vmax.f32 %v510, %v595
      %v608 = vmax.f32 %v513, %v598
      %609 = vrot.lane.b32.xlu0 %v415, 112
      %v610 = vpop.permute.xlu0 %609
      %611 = vrot.lane.b32.xlu0 %v416, 112
      %v612 = vpop.permute.xlu0 %611
      %613 = vrot.lane.b32.xlu0 %v417, 112
      %v614 = vpop.permute.xlu0 %613
      %615 = vrot.lane.b32.xlu0 %v418, 112
      %v616 = vpop.permute.xlu0 %615
      %v618 = vsel %vm434, %v610, 0
      %v621 = vsel %vm434, %v612, 0
      %v624 = vsel %vm434, %v614, 0
      %v627 = vsel %vm434, %v616, 0
      %629 = vmatprep.subr.bf16.mxu0 0
      %630 = vmatpush1.bf16.msra.mxu0 %v429
      %631 = vmatprep.subr.bf16.mxu0 0
      %632 = vmatpush1.bf16.msra.mxu0 %v430
      %633 = vmatprep.subr.bf16.mxu0 0
      %634 = vmatpush1.bf16.msra.mxu0 %v449
      %635 = vmatprep.subr.bf16.mxu0 0
      %636 = vmatpush1.bf16.msra.mxu0 0
      %637 = vmatprep.subr.bf16.mxu0 0
      %638 = vmatpush1.bf16.msra.mxu0 0
      %639 = vmatprep.subr.bf16.mxu0 0
      %640 = vmatpush1.bf16.msra.mxu0 0
      %641 = vmatprep.subr.bf16.mxu0 0
      %642 = vmatpush1.bf16.msra.mxu0 0
      %643 = vmatprep.subr.bf16.mxu0 0
      %644 = vmatpush1.bf16.msra.mxu0 0
      %645 = vmatprep.subr.bf16.mxu0 0
      %646 = vmatpush1.bf16.msra.mxu0 0
      %647 = vmatprep.subr.bf16.mxu0 0
      %648 = vmatpush1.bf16.msra.mxu0 0
      %649 = vmatprep.subr.bf16.mxu0 0
      %650 = vmatpush1.bf16.msra.mxu0 0
      %651 = vmatprep.subr.bf16.mxu0 0
      %652 = vmatpush1.bf16.msra.mxu0 0
      %653 = vmatprep.subr.bf16.mxu0 0
      %654 = vmatpush1.bf16.msra.mxu0 0
      %655 = vmatprep.subr.bf16.mxu0 0
      %656 = vmatpush1.bf16.msra.mxu0 0
      %657 = vmatprep.subr.bf16.mxu0 0
      %658 = vmatpush1.bf16.msra.mxu0 0
      %659 = vmatprep.subr.bf16.mxu0 0
      %660 = vmatpush1.bf16.msra.mxu0 0
      %661 = vmatprep.mubr.bf16.mxu0 0
      %662 = vmatmul.mubr.bf16.gmra.mrb[0].mxu0 %v618
      %v663 = vpop.f32.mrb[0].mxu0
      %v664 = vadd.f32 0.0, %v663
      %v665 = vpop.f32.mrb[0].mxu0
      %v666 = vpop.f32.mrb[0].mxu0
      %v667 = vadd.f32 0.0, %v666
      %v668 = vpop.f32.mrb[0].mxu0
      %669 = vmatprep.mubr.bf16.mxu0 0
      %670 = vmatmul.mubr.bf16.gmra.mrb[0].mxu0 %v621
      %v671 = vpop.f32.mrb[0].mxu0
      %v672 = vadd.f32 0.0, %v671
      %v673 = vpop.f32.mrb[0].mxu0
      %v674 = vpop.f32.mrb[0].mxu0
      %v675 = vadd.f32 0.0, %v674
      %v676 = vpop.f32.mrb[0].mxu0
      %677 = vmatprep.mubr.bf16.mxu0 0
      %678 = vmatmul.mubr.bf16.gmra.mrb[0].mxu0 %v624
      %v679 = vpop.f32.mrb[0].mxu0
      %v680 = vadd.f32 0.0, %v679
      %v681 = vpop.f32.mrb[0].mxu0
      %v682 = vpop.f32.mrb[0].mxu0
      %v683 = vadd.f32 0.0, %v682
      %v684 = vpop.f32.mrb[0].mxu0
      %685 = vmatprep.mubr.bf16.mxu0 0
      %686 = vmatmul.mubr.bf16.gmra.mrb[0].mxu0 %v627
      %v687 = vpop.f32.mrb[0].mxu0
      %v688 = vadd.f32 0.0, %v687
      %v689 = vpop.f32.mrb[0].mxu0
      %v690 = vpop.f32.mrb[0].mxu0
      %v691 = vadd.f32 0.0, %v690
      %v692 = vpop.f32.mrb[0].mxu0
      %693 = vdwg.mxu0
      %v694 = vmax.f32 %v601, %v664
      %v695 = vmax.f32 %v602, %v667
      %v696 = vmax.f32 %v603, %v672
      %v697 = vmax.f32 %v604, %v675
      %v698 = vmax.f32 %v605, %v680
      %v699 = vmax.f32 %v606, %v683
      %v700 = vmax.f32 %v607, %v688
      %v701 = vmax.f32 %v608, %v691
      %702 = vrot.lane.b32.xlu0 %v415, 104
      %v703 = vpop.permute.xlu0 %702
      %704 = vrot.lane.b32.xlu0 %v416, 104
      %v705 = vpop.permute.xlu0 %704
      %706 = vrot.lane.b32.xlu0 %v417, 104
      %v707 = vpop.permute.xlu0 %706
      %708 = vrot.lane.b32.xlu0 %v418, 104
      %v709 = vpop.permute.xlu0 %708
      %v711 = vsel %vm434, %v703, 0
      %v714 = vsel %vm434, %v705, 0
      %v717 = vsel %vm434, %v707, 0
      %v720 = vsel %vm434, %v709, 0
      %722 = vmatprep.subr.bf16.mxu0 0
      %723 = vmatpush1.bf16.msra.mxu0 %v429
      %724 = vmatprep.subr.bf16.mxu0 0
      %725 = vmatpush1.bf16.msra.mxu0 %v430
      %726 = vmatprep.subr.bf16.mxu0 0
      %727 = vmatpush1.bf16.msra.mxu0 %v449
      %728 = vmatprep.subr.bf16.mxu0 0
      %729 = vmatpush1.bf16.msra.mxu0 0
      %730 = vmatprep.subr.bf16.mxu0 0
      %731 = vmatpush1.bf16.msra.mxu0 0
      %732 = vmatprep.subr.bf16.mxu0 0
      %733 = vmatpush1.bf16.msra.mxu0 0
      %734 = vmatprep.subr.bf16.mxu0 0
      %735 = vmatpush1.bf16.msra.mxu0 0
      %736 = vmatprep.subr.bf16.mxu0 0
      %737 = vmatpush1.bf16.msra.mxu0 0
      %738 = vmatprep.subr.bf16.mxu0 0
      %739 = vmatpush1.bf16.msra.mxu0 0
      %740 = vmatprep.subr.bf16.mxu0 0
      %741 = vmatpush1.bf16.msra.mxu0 0
      %742 = vmatprep.subr.bf16.mxu0 0
      %743 = vmatpush1.bf16.msra.mxu0 0
      %744 = vmatprep.subr.bf16.mxu0 0
      %745 = vmatpush1.bf16.msra.mxu0 0
      %746 = vmatprep.subr.bf16.mxu0 0
      %747 = vmatpush1.bf16.msra.mxu0 0
      %748 = vmatprep.subr.bf16.mxu0 0
      %749 = vmatpush1.bf16.msra.mxu0 0
      %750 = vmatprep.subr.bf16.mxu0 0
      %751 = vmatpush1.bf16.msra.mxu0 0
      %752 = vmatprep.subr.bf16.mxu0 0
      %753 = vmatpush1.bf16.msra.mxu0 0
      %754 = vmatprep.mubr.bf16.mxu0 0
      %755 = vmatmul.mubr.bf16.gmra.mrb[0].mxu0 %v711
      %v756 = vpop.f32.mrb[0].mxu0
      %v757 = vadd.f32 0.0, %v756
      %v758 = vpop.f32.mrb[0].mxu0
      %v759 = vpop.f32.mrb[0].mxu0
      %v760 = vadd.f32 0.0, %v759
      %v761 = vpop.f32.mrb[0].mxu0
      %762 = vmatprep.mubr.bf16.mxu0 0
      %763 = vmatmul.mubr.bf16.gmra.mrb[0].mxu0 %v714
      %v764 = vpop.f32.mrb[0].mxu0
      %v765 = vadd.f32 0.0, %v764
      %v766 = vpop.f32.mrb[0].mxu0
      %v767 = vpop.f32.mrb[0].mxu0
      %v768 = vadd.f32 0.0, %v767
      %v769 = vpop.f32.mrb[0].mxu0
      %770 = vmatprep.mubr.bf16.mxu0 0
      %771 = vmatmul.mubr.bf16.gmra.mrb[0].mxu0 %v717
      %v772 = vpop.f32.mrb[0].mxu0
      %v773 = vadd.f32 0.0, %v772
      %v774 = vpop.f32.mrb[0].mxu0
      %v775 = vpop.f32.mrb[0].mxu0
      %v776 = vadd.f32 0.0, %v775
      %v777 = vpop.f32.mrb[0].mxu0
      %778 = vmatprep.mubr.bf16.mxu0 0
      %779 = vmatmul.mubr.bf16.gmra.mrb[0].mxu0 %v720
      %v780 = vpop.f32.mrb[0].mxu0
      %v781 = vadd.f32 0.0, %v780
      %v782 = vpop.f32.mrb[0].mxu0
      %v783 = vpop.f32.mrb[0].mxu0
      %v784 = vadd.f32 0.0, %v783
      %v785 = vpop.f32.mrb[0].mxu0
      %786 = vdwg.mxu0
      %v787 = vmax.f32 %v694, %v757
      %v788 = vmax.f32 %v695, %v760
      %v789 = vmax.f32 %v696, %v765
      %v790 = vmax.f32 %v697, %v768
      %v791 = vmax.f32 %v698, %v773
      %v792 = vmax.f32 %v699, %v776
      %v793 = vmax.f32 %v700, %v781
      %v794 = vmax.f32 %v701, %v784
      %795 = vrot.lane.b32.xlu0 %v415, 96
      %v796 = vpop.permute.xlu0 %795
      %797 = vrot.lane.b32.xlu0 %v416, 96
      %v798 = vpop.permute.xlu0 %797
      %799 = vrot.lane.b32.xlu0 %v417, 96
      %v800 = vpop.permute.xlu0 %799
      %801 = vrot.lane.b32.xlu0 %v418, 96
      %v802 = vpop.permute.xlu0 %801
      %v804 = vsel %vm434, %v796, 0
      %v807 = vsel %vm434, %v798, 0
      %v810 = vsel %vm434, %v800, 0
      %v813 = vsel %vm434, %v802, 0
      %815 = vmatprep.subr.bf16.mxu0 0
      %816 = vmatpush1.bf16.msra.mxu0 %v429
      %817 = vmatprep.subr.bf16.mxu0 0
      %818 = vmatpush1.bf16.msra.mxu0 %v430
      %819 = vmatprep.subr.bf16.mxu0 0
      %820 = vmatpush1.bf16.msra.mxu0 %v449
      %821 = vmatprep.subr.bf16.mxu0 0
      %822 = vmatpush1.bf16.msra.mxu0 0
      %823 = vmatprep.subr.bf16.mxu0 0
      %824 = vmatpush1.bf16.msra.mxu0 0
      %825 = vmatprep.subr.bf16.mxu0 0
      %826 = vmatpush1.bf16.msra.mxu0 0
      %827 = vmatprep.subr.bf16.mxu0 0
      %828 = vmatpush1.bf16.msra.mxu0 0
      %829 = vmatprep.subr.bf16.mxu0 0
      %830 = vmatpush1.bf16.msra.mxu0 0
      %831 = vmatprep.subr.bf16.mxu0 0
      %832 = vmatpush1.bf16.msra.mxu0 0
      %833 = vmatprep.subr.bf16.mxu0 0
      %834 = vmatpush1.bf16.msra.mxu0 0
      %835 = vmatprep.subr.bf16.mxu0 0
      %836 = vmatpush1.bf16.msra.mxu0 0
      %837 = vmatprep.subr.bf16.mxu0 0
      %838 = vmatpush1.bf16.msra.mxu0 0
      %839 = vmatprep.subr.bf16.mxu0 0
      %840 = vmatpush1.bf16.msra.mxu0 0
      %841 = vmatprep.subr.bf16.mxu0 0
      %842 = vmatpush1.bf16.msra.mxu0 0
      %843 = vmatprep.subr.bf16.mxu0 0
      %844 = vmatpush1.bf16.msra.mxu0 0
      %845 = vmatprep.subr.bf16.mxu0 0
      %846 = vmatpush1.bf16.msra.mxu0 0
      %847 = vmatprep.mubr.bf16.mxu0 0
      %848 = vmatmul.mubr.bf16.gmra.mrb[0].mxu0 %v804
      %v849 = vpop.f32.mrb[0].mxu0
      %v850 = vadd.f32 0.0, %v849
      %v851 = vpop.f32.mrb[0].mxu0
      %v852 = vpop.f32.mrb[0].mxu0
      %v853 = vadd.f32 0.0, %v852
      %v854 = vpop.f32.mrb[0].mxu0
      %855 = vmatprep.mubr.bf16.mxu0 0
      %856 = vmatmul.mubr.bf16.gmra.mrb[0].mxu0 %v807
      %v857 = vpop.f32.mrb[0].mxu0
      %v858 = vadd.f32 0.0, %v857
      %v859 = vpop.f32.mrb[0].mxu0
      %v860 = vpop.f32.mrb[0].mxu0
      %v861 = vadd.f32 0.0, %v860
      %v862 = vpop.f32.mrb[0].mxu0
      %863 = vmatprep.mubr.bf16.mxu0 0
      %864 = vmatmul.mubr.bf16.gmra.mrb[0].mxu0 %v810
      %v865 = vpop.f32.mrb[0].mxu0
      %v866 = vadd.f32 0.0, %v865
      %v867 = vpop.f32.mrb[0].mxu0
      %v868 = vpop.f32.mrb[0].mxu0
      %v869 = vadd.f32 0.0, %v868
      %v870 = vpop.f32.mrb[0].mxu0
      %871 = vmatprep.mubr.bf16.mxu0 0
      %872 = vmatmul.mubr.bf16.gmra.mrb[0].mxu0 %v813
      %v873 = vpop.f32.mrb[0].mxu0
      %v874 = vadd.f32 0.0, %v873
      %v875 = vpop.f32.mrb[0].mxu0
      %v876 = vpop.f32.mrb[0].mxu0
      %v877 = vadd.f32 0.0, %v876
      %v878 = vpop.f32.mrb[0].mxu0
      %879 = vdwg.mxu0
      %v880 = vmax.f32 %v787, %v850
      %v881 = vmax.f32 %v788, %v853
      %v882 = vmax.f32 %v789, %v858
      %v883 = vmax.f32 %v790, %v861
      %v884 = vmax.f32 %v791, %v866
      %v885 = vmax.f32 %v792, %v869
      %v886 = vmax.f32 %v793, %v874
      %v887 = vmax.f32 %v794, %v877
      %888 = vrot.lane.b32.xlu0 %v415, 88
      %v889 = vpop.permute.xlu0 %888
      %890 = vrot.lane.b32.xlu0 %v416, 88
      %v891 = vpop.permute.xlu0 %890
      %892 = vrot.lane.b32.xlu0 %v417, 88
      %v893 = vpop.permute.xlu0 %892
      %894 = vrot.lane.b32.xlu0 %v418, 88
      %v895 = vpop.permute.xlu0 %894
      %v897 = vsel %vm434, %v889, 0
      %v900 = vsel %vm434, %v891, 0
      %v903 = vsel %vm434, %v893, 0
      %v906 = vsel %vm434, %v895, 0
      %908 = vmatprep.subr.bf16.mxu0 0
      %909 = vmatpush1.bf16.msra.mxu0 %v429
      %910 = vmatprep.subr.bf16.mxu0 0
      %911 = vmatpush1.bf16.msra.mxu0 %v430
      %912 = vmatprep.subr.bf16.mxu0 0
      %913 = vmatpush1.bf16.msra.mxu0 %v449
      %914 = vmatprep.subr.bf16.mxu0 0
      %915 = vmatpush1.bf16.msra.mxu0 0
      %916 = vmatprep.subr.bf16.mxu0 0
      %917 = vmatpush1.bf16.msra.mxu0 0
      %918 = vmatprep.subr.bf16.mxu0 0
      %919 = vmatpush1.bf16.msra.mxu0 0
      %920 = vmatprep.subr.bf16.mxu0 0
      %921 = vmatpush1.bf16.msra.mxu0 0
      %922 = vmatprep.subr.bf16.mxu0 0
      %923 = vmatpush1.bf16.msra.mxu0 0
      %924 = vmatprep.subr.bf16.mxu0 0
      %925 = vmatpush1.bf16.msra.mxu0 0
      %926 = vmatprep.subr.bf16.mxu0 0
      %927 = vmatpush1.bf16.msra.mxu0 0
      %928 = vmatprep.subr.bf16.mxu0 0
      %929 = vmatpush1.bf16.msra.mxu0 0
      %930 = vmatprep.subr.bf16.mxu0 0
      %931 = vmatpush1.bf16.msra.mxu0 0
      %932 = vmatprep.subr.bf16.mxu0 0
      %933 = vmatpush1.bf16.msra.mxu0 0
      %934 = vmatprep.subr.bf16.mxu0 0
      %935 = vmatpush1.bf16.msra.mxu0 0
      %936 = vmatprep.subr.bf16.mxu0 0
      %937 = vmatpush1.bf16.msra.mxu0 0
      %938 = vmatprep.subr.bf16.mxu0 0
      %939 = vmatpush1.bf16.msra.mxu0 0
      %940 = vmatprep.mubr.bf16.mxu0 0
      %941 = vmatmul.mubr.bf16.gmra.mrb[0].mxu0 %v897
      %v942 = vpop.f32.mrb[0].mxu0
      %v943 = vadd.f32 0.0, %v942
      %v944 = vpop.f32.mrb[0].mxu0
      %v945 = vpop.f32.mrb[0].mxu0
      %v946 = vadd.f32 0.0, %v945
      %v947 = vpop.f32.mrb[0].mxu0
      %948 = vmatprep.mubr.bf16.mxu0 0
      %949 = vmatmul.mubr.bf16.gmra.mrb[0].mxu0 %v900
      %v950 = vpop.f32.mrb[0].mxu0
      %v951 = vadd.f32 0.0, %v950
      %v952 = vpop.f32.mrb[0].mxu0
      %v953 = vpop.f32.mrb[0].mxu0
      %v954 = vadd.f32 0.0, %v953
      %v955 = vpop.f32.mrb[0].mxu0
      %956 = vmatprep.mubr.bf16.mxu0 0
      %957 = vmatmul.mubr.bf16.gmra.mrb[0].mxu0 %v903
      %v958 = vpop.f32.mrb[0].mxu0
      %v959 = vadd.f32 0.0, %v958
      %v960 = vpop.f32.mrb[0].mxu0
      %v961 = vpop.f32.mrb[0].mxu0
      %v962 = vadd.f32 0.0, %v961
      %v963 = vpop.f32.mrb[0].mxu0
      %964 = vmatprep.mubr.bf16.mxu0 0
      %965 = vmatmul.mubr.bf16.gmra.mrb[0].mxu0 %v906
      %v966 = vpop.f32.mrb[0].mxu0
      %v967 = vadd.f32 0.0, %v966
      %v968 = vpop.f32.mrb[0].mxu0
      %v969 = vpop.f32.mrb[0].mxu0
      %v970 = vadd.f32 0.0, %v969
      %v971 = vpop.f32.mrb[0].mxu0
      %972 = vdwg.mxu0
      %v973 = vmax.f32 %v880, %v943
      %v974 = vmax.f32 %v881, %v946
      %v975 = vmax.f32 %v882, %v951
      %v976 = vmax.f32 %v883, %v954
      %v977 = vmax.f32 %v884, %v959
      %v978 = vmax.f32 %v885, %v962
      %v979 = vmax.f32 %v886, %v967
      %v980 = vmax.f32 %v887, %v970
      %981 = vrot.lane.b32.xlu0 %v415, 80
      %v982 = vpop.permute.xlu0 %981
      %983 = vrot.lane.b32.xlu0 %v416, 80
      %v984 = vpop.permute.xlu0 %983
      %985 = vrot.lane.b32.xlu0 %v417, 80
      %v986 = vpop.permute.xlu0 %985
      %987 = vrot.lane.b32.xlu0 %v418, 80
      %v988 = vpop.permute.xlu0 %987
      %v990 = vsel %vm434, %v982, 0
      %v993 = vsel %vm434, %v984, 0
      %v996 = vsel %vm434, %v986, 0
      %v999 = vsel %vm434, %v988, 0
      %1001 = vmatprep.subr.bf16.mxu0 0
      %1002 = vmatpush1.bf16.msra.mxu0 %v429
      %1003 = vmatprep.subr.bf16.mxu0 0
      %1004 = vmatpush1.bf16.msra.mxu0 %v430
      %1005 = vmatprep.subr.bf16.mxu0 0
      %1006 = vmatpush1.bf16.msra.mxu0 %v449
      %1007 = vmatprep.subr.bf16.mxu0 0
      %1008 = vmatpush1.bf16.msra.mxu0 0
      %1009 = vmatprep.subr.bf16.mxu0 0
      %1010 = vmatpush1.bf16.msra.mxu0 0
      %1011 = vmatprep.subr.bf16.mxu0 0
      %1012 = vmatpush1.bf16.msra.mxu0 0
      %1013 = vmatprep.subr.bf16.mxu0 0
      %1014 = vmatpush1.bf16.msra.mxu0 0
      %1015 = vmatprep.subr.bf16.mxu0 0
      %1016 = vmatpush1.bf16.msra.mxu0 0
      %1017 = vmatprep.subr.bf16.mxu0 0
      %1018 = vmatpush1.bf16.msra.mxu0 0
      %1019 = vmatprep.subr.bf16.mxu0 0
      %1020 = vmatpush1.bf16.msra.mxu0 0
      %1021 = vmatprep.subr.bf16.mxu0 0
      %1022 = vmatpush1.bf16.msra.mxu0 0
      %1023 = vmatprep.subr.bf16.mxu0 0
      %1024 = vmatpush1.bf16.msra.mxu0 0
      %1025 = vmatprep.subr.bf16.mxu0 0
      %1026 = vmatpush1.bf16.msra.mxu0 0
      %1027 = vmatprep.subr.bf16.mxu0 0
      %1028 = vmatpush1.bf16.msra.mxu0 0
      %1029 = vmatprep.subr.bf16.mxu0 0
      %1030 = vmatpush1.bf16.msra.mxu0 0
      %1031 = vmatprep.subr.bf16.mxu0 0
      %1032 = vmatpush1.bf16.msra.mxu0 0
      %1033 = vmatprep.mubr.bf16.mxu0 0
      %1034 = vmatmul.mubr.bf16.gmra.mrb[0].mxu0 %v990
      %v1035 = vpop.f32.mrb[0].mxu0
      %v1036 = vadd.f32 0.0, %v1035
      %v1037 = vpop.f32.mrb[0].mxu0
      %v1038 = vpop.f32.mrb[0].mxu0
      %v1039 = vadd.f32 0.0, %v1038
      %v1040 = vpop.f32.mrb[0].mxu0
      %1041 = vmatprep.mubr.bf16.mxu0 0
      %1042 = vmatmul.mubr.bf16.gmra.mrb[0].mxu0 %v993
      %v1043 = vpop.f32.mrb[0].mxu0
      %v1044 = vadd.f32 0.0, %v1043
      %v1045 = vpop.f32.mrb[0].mxu0
      %v1046 = vpop.f32.mrb[0].mxu0
      %v1047 = vadd.f32 0.0, %v1046
      %v1048 = vpop.f32.mrb[0].mxu0
      %1049 = vmatprep.mubr.bf16.mxu0 0
      %1050 = vmatmul.mubr.bf16.gmra.mrb[0].mxu0 %v996
      %v1051 = vpop.f32.mrb[0].mxu0
      %v1052 = vadd.f32 0.0, %v1051
      %v1053 = vpop.f32.mrb[0].mxu0
      %v1054 = vpop.f32.mrb[0].mxu0
      %v1055 = vadd.f32 0.0, %v1054
      %v1056 = vpop.f32.mrb[0].mxu0
      %1057 = vmatprep.mubr.bf16.mxu0 0
      %1058 = vmatmul.mubr.bf16.gmra.mrb[0].mxu0 %v999
      %v1059 = vpop.f32.mrb[0].mxu0
      %v1060 = vadd.f32 0.0, %v1059
      %v1061 = vpop.f32.mrb[0].mxu0
      %v1062 = vpop.f32.mrb[0].mxu0
      %v1063 = vadd.f32 0.0, %v1062
      %v1064 = vpop.f32.mrb[0].mxu0
      %1065 = vdwg.mxu0
      %v1066 = vmax.f32 %v973, %v1036
      %v1067 = vmax.f32 %v974, %v1039
      %v1068 = vmax.f32 %v975, %v1044
      %v1069 = vmax.f32 %v976, %v1047
      %v1070 = vmax.f32 %v977, %v1052
      %v1071 = vmax.f32 %v978, %v1055
      %v1072 = vmax.f32 %v979, %v1060
      %v1073 = vmax.f32 %v980, %v1063
      %1074 = vrot.lane.b32.xlu0 %v415, 72
      %v1075 = vpop.permute.xlu0 %1074
      %1076 = vrot.lane.b32.xlu0 %v416, 72
      %v1077 = vpop.permute.xlu0 %1076
      %1078 = vrot.lane.b32.xlu0 %v417, 72
      %v1079 = vpop.permute.xlu0 %1078
      %1080 = vrot.lane.b32.xlu0 %v418, 72
      %v1081 = vpop.permute.xlu0 %1080
      %v1083 = vsel %vm434, %v1075, 0
      %v1086 = vsel %vm434, %v1077, 0
      %v1089 = vsel %vm434, %v1079, 0
      %v1092 = vsel %vm434, %v1081, 0
      %1094 = vmatprep.subr.bf16.mxu0 0
      %1095 = vmatpush1.bf16.msra.mxu0 %v429
      %1096 = vmatprep.subr.bf16.mxu0 0
      %1097 = vmatpush1.bf16.msra.mxu0 %v430
      %1098 = vmatprep.subr.bf16.mxu0 0
      %1099 = vmatpush1.bf16.msra.mxu0 %v449
      %1100 = vmatprep.subr.bf16.mxu0 0
      %1101 = vmatpush1.bf16.msra.mxu0 0
      %1102 = vmatprep.subr.bf16.mxu0 0
      %1103 = vmatpush1.bf16.msra.mxu0 0
      %1104 = vmatprep.subr.bf16.mxu0 0
      %1105 = vmatpush1.bf16.msra.mxu0 0
      %1106 = vmatprep.subr.bf16.mxu0 0
      %1107 = vmatpush1.bf16.msra.mxu0 0
      %1108 = vmatprep.subr.bf16.mxu0 0
      %1109 = vmatpush1.bf16.msra.mxu0 0
      %1110 = vmatprep.subr.bf16.mxu0 0
      %1111 = vmatpush1.bf16.msra.mxu0 0
      %1112 = vmatprep.subr.bf16.mxu0 0
      %1113 = vmatpush1.bf16.msra.mxu0 0
      %1114 = vmatprep.subr.bf16.mxu0 0
      %1115 = vmatpush1.bf16.msra.mxu0 0
      %1116 = vmatprep.subr.bf16.mxu0 0
      %1117 = vmatpush1.bf16.msra.mxu0 0
      %1118 = vmatprep.subr.bf16.mxu0 0
      %1119 = vmatpush1.bf16.msra.mxu0 0
      %1120 = vmatprep.subr.bf16.mxu0 0
      %1121 = vmatpush1.bf16.msra.mxu0 0
      %1122 = vmatprep.subr.bf16.mxu0 0
      %1123 = vmatpush1.bf16.msra.mxu0 0
      %1124 = vmatprep.subr.bf16.mxu0 0
      %1125 = vmatpush1.bf16.msra.mxu0 0
      %1126 = vmatprep.mubr.bf16.mxu0 0
      %1127 = vmatmul.mubr.bf16.gmra.mrb[0].mxu0 %v1083
      %v1128 = vpop.f32.mrb[0].mxu0
      %v1129 = vadd.f32 0.0, %v1128
      %v1130 = vpop.f32.mrb[0].mxu0
      %v1131 = vpop.f32.mrb[0].mxu0
      %v1132 = vadd.f32 0.0, %v1131
      %v1133 = vpop.f32.mrb[0].mxu0
      %1134 = vmatprep.mubr.bf16.mxu0 0
      %1135 = vmatmul.mubr.bf16.gmra.mrb[0].mxu0 %v1086
      %v1136 = vpop.f32.mrb[0].mxu0
      %v1137 = vadd.f32 0.0, %v1136
      %v1138 = vpop.f32.mrb[0].mxu0
      %v1139 = vpop.f32.mrb[0].mxu0
      %v1140 = vadd.f32 0.0, %v1139
      %v1141 = vpop.f32.mrb[0].mxu0
      %1142 = vmatprep.mubr.bf16.mxu0 0
      %1143 = vmatmul.mubr.bf16.gmra.mrb[0].mxu0 %v1089
      %v1144 = vpop.f32.mrb[0].mxu0
      %v1145 = vadd.f32 0.0, %v1144
      %v1146 = vpop.f32.mrb[0].mxu0
      %v1147 = vpop.f32.mrb[0].mxu0
      %v1148 = vadd.f32 0.0, %v1147
      %v1149 = vpop.f32.mrb[0].mxu0
      %1150 = vmatprep.mubr.bf16.mxu0 0
      %1151 = vmatmul.mubr.bf16.gmra.mrb[0].mxu0 %v1092
      %v1152 = vpop.f32.mrb[0].mxu0
      %v1153 = vadd.f32 0.0, %v1152
      %v1154 = vpop.f32.mrb[0].mxu0
      %v1155 = vpop.f32.mrb[0].mxu0
      %v1156 = vadd.f32 0.0, %v1155
      %v1157 = vpop.f32.mrb[0].mxu0
      %1158 = vdwg.mxu0
      %v1159 = vmax.f32 %v1066, %v1129
      %v1160 = vmax.f32 %v1067, %v1132
      %v1161 = vmax.f32 %v1068, %v1137
      %v1162 = vmax.f32 %v1069, %v1140
      %v1163 = vmax.f32 %v1070, %v1145
      %v1164 = vmax.f32 %v1071, %v1148
      %v1165 = vmax.f32 %v1072, %v1153
      %v1166 = vmax.f32 %v1073, %v1156
      %1167 = vrot.lane.b32.xlu0 %v415, 64
      %v1168 = vpop.permute.xlu0 %1167
      %1169 = vrot.lane.b32.xlu0 %v416, 64
      %v1170 = vpop.permute.xlu0 %1169
      %1171 = vrot.lane.b32.xlu0 %v417, 64
      %v1172 = vpop.permute.xlu0 %1171
      %1173 = vrot.lane.b32.xlu0 %v418, 64
      %v1174 = vpop.permute.xlu0 %1173
      %v1176 = vsel %vm434, %v1168, 0
      %v1179 = vsel %vm434, %v1170, 0
      %v1182 = vsel %vm434, %v1172, 0
      %v1185 = vsel %vm434, %v1174, 0
      %1187 = vmatprep.subr.bf16.mxu0 0
      %1188 = vmatpush1.bf16.msra.mxu0 %v429
      %1189 = vmatprep.subr.bf16.mxu0 0
      %1190 = vmatpush1.bf16.msra.mxu0 %v430
      %1191 = vmatprep.subr.bf16.mxu0 0
      %1192 = vmatpush1.bf16.msra.mxu0 %v449
      %1193 = vmatprep.subr.bf16.mxu0 0
      %1194 = vmatpush1.bf16.msra.mxu0 0
      %1195 = vmatprep.subr.bf16.mxu0 0
      %1196 = vmatpush1.bf16.msra.mxu0 0
      %1197 = vmatprep.subr.bf16.mxu0 0
      %1198 = vmatpush1.bf16.msra.mxu0 0
      %1199 = vmatprep.subr.bf16.mxu0 0
      %1200 = vmatpush1.bf16.msra.mxu0 0
      %1201 = vmatprep.subr.bf16.mxu0 0
      %1202 = vmatpush1.bf16.msra.mxu0 0
      %1203 = vmatprep.subr.bf16.mxu0 0
      %1204 = vmatpush1.bf16.msra.mxu0 0
      %1205 = vmatprep.subr.bf16.mxu0 0
      %1206 = vmatpush1.bf16.msra.mxu0 0
      %1207 = vmatprep.subr.bf16.mxu0 0
      %1208 = vmatpush1.bf16.msra.mxu0 0
      %1209 = vmatprep.subr.bf16.mxu0 0
      %1210 = vmatpush1.bf16.msra.mxu0 0
      %1211 = vmatprep.subr.bf16.mxu0 0
      %1212 = vmatpush1.bf16.msra.mxu0 0
      %1213 = vmatprep.subr.bf16.mxu0 0
      %1214 = vmatpush1.bf16.msra.mxu0 0
      %1215 = vmatprep.subr.bf16.mxu0 0
      %1216 = vmatpush1.bf16.msra.mxu0 0
      %1217 = vmatprep.subr.bf16.mxu0 0
      %1218 = vmatpush1.bf16.msra.mxu0 0
      %1219 = vmatprep.mubr.bf16.mxu0 0
      %1220 = vmatmul.mubr.bf16.gmra.mrb[0].mxu0 %v1176
      %v1221 = vpop.f32.mrb[0].mxu0
      %v1222 = vadd.f32 0.0, %v1221
      %v1223 = vpop.f32.mrb[0].mxu0
      %v1224 = vpop.f32.mrb[0].mxu0
      %v1225 = vadd.f32 0.0, %v1224
      %v1226 = vpop.f32.mrb[0].mxu0
      %1227 = vmatprep.mubr.bf16.mxu0 0
      %1228 = vmatmul.mubr.bf16.gmra.mrb[0].mxu0 %v1179
      %v1229 = vpop.f32.mrb[0].mxu0
      %v1230 = vadd.f32 0.0, %v1229
      %v1231 = vpop.f32.mrb[0].mxu0
      %v1232 = vpop.f32.mrb[0].mxu0
      %v1233 = vadd.f32 0.0, %v1232
      %v1234 = vpop.f32.mrb[0].mxu0
      %1235 = vmatprep.mubr.bf16.mxu0 0
      %1236 = vmatmul.mubr.bf16.gmra.mrb[0].mxu0 %v1182
      %v1237 = vpop.f32.mrb[0].mxu0
      %v1238 = vadd.f32 0.0, %v1237
      %v1239 = vpop.f32.mrb[0].mxu0
      %v1240 = vpop.f32.mrb[0].mxu0
      %v1241 = vadd.f32 0.0, %v1240
      %v1242 = vpop.f32.mrb[0].mxu0
      %1243 = vmatprep.mubr.bf16.mxu0 0
      %1244 = vmatmul.mubr.bf16.gmra.mrb[0].mxu0 %v1185
      %v1245 = vpop.f32.mrb[0].mxu0
      %v1246 = vadd.f32 0.0, %v1245
      %v1247 = vpop.f32.mrb[0].mxu0
      %v1248 = vpop.f32.mrb[0].mxu0
      %v1249 = vadd.f32 0.0, %v1248
      %v1250 = vpop.f32.mrb[0].mxu0
      %1251 = vdwg.mxu0
      %v1252 = vmax.f32 %v1159, %v1222
      %v1253 = vmax.f32 %v1160, %v1225
      %v1254 = vmax.f32 %v1161, %v1230
      %v1255 = vmax.f32 %v1162, %v1233
      %v1256 = vmax.f32 %v1163, %v1238
      %v1257 = vmax.f32 %v1164, %v1241
      %v1258 = vmax.f32 %v1165, %v1246
      %v1259 = vmax.f32 %v1166, %v1249
      %1260 = vrot.lane.b32.xlu0 %v415, 56
      %v1261 = vpop.permute.xlu0 %1260
      %1262 = vrot.lane.b32.xlu0 %v416, 56
      %v1263 = vpop.permute.xlu0 %1262
      %1264 = vrot.lane.b32.xlu0 %v417, 56
      %v1265 = vpop.permute.xlu0 %1264
      %1266 = vrot.lane.b32.xlu0 %v418, 56
      %v1267 = vpop.permute.xlu0 %1266
      %v1269 = vsel %vm434, %v1261, 0
      %v1272 = vsel %vm434, %v1263, 0
      %v1275 = vsel %vm434, %v1265, 0
      %v1278 = vsel %vm434, %v1267, 0
      %1280 = vmatprep.subr.bf16.mxu0 0
      %1281 = vmatpush1.bf16.msra.mxu0 %v429
      %1282 = vmatprep.subr.bf16.mxu0 0
      %1283 = vmatpush1.bf16.msra.mxu0 %v430
      %1284 = vmatprep.subr.bf16.mxu0 0
      %1285 = vmatpush1.bf16.msra.mxu0 %v449
      %1286 = vmatprep.subr.bf16.mxu0 0
      %1287 = vmatpush1.bf16.msra.mxu0 0
      %1288 = vmatprep.subr.bf16.mxu0 0
      %1289 = vmatpush1.bf16.msra.mxu0 0
      %1290 = vmatprep.subr.bf16.mxu0 0
      %1291 = vmatpush1.bf16.msra.mxu0 0
      %1292 = vmatprep.subr.bf16.mxu0 0
      %1293 = vmatpush1.bf16.msra.mxu0 0
      %1294 = vmatprep.subr.bf16.mxu0 0
      %1295 = vmatpush1.bf16.msra.mxu0 0
      %1296 = vmatprep.subr.bf16.mxu0 0
      %1297 = vmatpush1.bf16.msra.mxu0 0
      %1298 = vmatprep.subr.bf16.mxu0 0
      %1299 = vmatpush1.bf16.msra.mxu0 0
      %1300 = vmatprep.subr.bf16.mxu0 0
      %1301 = vmatpush1.bf16.msra.mxu0 0
      %1302 = vmatprep.subr.bf16.mxu0 0
      %1303 = vmatpush1.bf16.msra.mxu0 0
      %1304 = vmatprep.subr.bf16.mxu0 0
      %1305 = vmatpush1.bf16.msra.mxu0 0
      %1306 = vmatprep.subr.bf16.mxu0 0
      %1307 = vmatpush1.bf16.msra.mxu0 0
      %1308 = vmatprep.subr.bf16.mxu0 0
      %1309 = vmatpush1.bf16.msra.mxu0 0
      %1310 = vmatprep.subr.bf16.mxu0 0
      %1311 = vmatpush1.bf16.msra.mxu0 0
      %1312 = vmatprep.mubr.bf16.mxu0 0
      %1313 = vmatmul.mubr.bf16.gmra.mrb[0].mxu0 %v1269
      %v1314 = vpop.f32.mrb[0].mxu0
      %v1315 = vadd.f32 0.0, %v1314
      %v1316 = vpop.f32.mrb[0].mxu0
      %v1317 = vpop.f32.mrb[0].mxu0
      %v1318 = vadd.f32 0.0, %v1317
      %v1319 = vpop.f32.mrb[0].mxu0
      %1320 = vmatprep.mubr.bf16.mxu0 0
      %1321 = vmatmul.mubr.bf16.gmra.mrb[0].mxu0 %v1272
      %v1322 = vpop.f32.mrb[0].mxu0
      %v1323 = vadd.f32 0.0, %v1322
      %v1324 = vpop.f32.mrb[0].mxu0
      %v1325 = vpop.f32.mrb[0].mxu0
      %v1326 = vadd.f32 0.0, %v1325
      %v1327 = vpop.f32.mrb[0].mxu0
      %1328 = vmatprep.mubr.bf16.mxu0 0
      %1329 = vmatmul.mubr.bf16.gmra.mrb[0].mxu0 %v1275
      %v1330 = vpop.f32.mrb[0].mxu0
      %v1331 = vadd.f32 0.0, %v1330
      %v1332 = vpop.f32.mrb[0].mxu0
      %v1333 = vpop.f32.mrb[0].mxu0
      %v1334 = vadd.f32 0.0, %v1333
      %v1335 = vpop.f32.mrb[0].mxu0
      %1336 = vmatprep.mubr.bf16.mxu0 0
      %1337 = vmatmul.mubr.bf16.gmra.mrb[0].mxu0 %v1278
      %v1338 = vpop.f32.mrb[0].mxu0
      %v1339 = vadd.f32 0.0, %v1338
      %v1340 = vpop.f32.mrb[0].mxu0
      %v1341 = vpop.f32.mrb[0].mxu0
      %v1342 = vadd.f32 0.0, %v1341
      %v1343 = vpop.f32.mrb[0].mxu0
      %1344 = vdwg.mxu0
      %v1345 = vmax.f32 %v1252, %v1315
      %v1346 = vmax.f32 %v1253, %v1318
      %v1347 = vmax.f32 %v1254, %v1323
      %v1348 = vmax.f32 %v1255, %v1326
      %v1349 = vmax.f32 %v1256, %v1331
      %v1350 = vmax.f32 %v1257, %v1334
      %v1351 = vmax.f32 %v1258, %v1339
      %v1352 = vmax.f32 %v1259, %v1342
      %1353 = vrot.lane.b32.xlu0 %v415, 48
      %v1354 = vpop.permute.xlu0 %1353
      %1355 = vrot.lane.b32.xlu0 %v416, 48
      %v1356 = vpop.permute.xlu0 %1355
      %1357 = vrot.lane.b32.xlu0 %v417, 48
      %v1358 = vpop.permute.xlu0 %1357
      %1359 = vrot.lane.b32.xlu0 %v418, 48
      %v1360 = vpop.permute.xlu0 %1359
      %v1362 = vsel %vm434, %v1354, 0
      %v1365 = vsel %vm434, %v1356, 0
      %v1368 = vsel %vm434, %v1358, 0
      %v1371 = vsel %vm434, %v1360, 0
      %1373 = vmatprep.subr.bf16.mxu0 0
      %1374 = vmatpush1.bf16.msra.mxu0 %v429
      %1375 = vmatprep.subr.bf16.mxu0 0
      %1376 = vmatpush1.bf16.msra.mxu0 %v430
      %1377 = vmatprep.subr.bf16.mxu0 0
      %1378 = vmatpush1.bf16.msra.mxu0 %v449
      %1379 = vmatprep.subr.bf16.mxu0 0
      %1380 = vmatpush1.bf16.msra.mxu0 0
      %1381 = vmatprep.subr.bf16.mxu0 0
      %1382 = vmatpush1.bf16.msra.mxu0 0
      %1383 = vmatprep.subr.bf16.mxu0 0
      %1384 = vmatpush1.bf16.msra.mxu0 0
      %1385 = vmatprep.subr.bf16.mxu0 0
      %1386 = vmatpush1.bf16.msra.mxu0 0
      %1387 = vmatprep.subr.bf16.mxu0 0
      %1388 = vmatpush1.bf16.msra.mxu0 0
      %1389 = vmatprep.subr.bf16.mxu0 0
      %1390 = vmatpush1.bf16.msra.mxu0 0
      %1391 = vmatprep.subr.bf16.mxu0 0
      %1392 = vmatpush1.bf16.msra.mxu0 0
      %1393 = vmatprep.subr.bf16.mxu0 0
      %1394 = vmatpush1.bf16.msra.mxu0 0
      %1395 = vmatprep.subr.bf16.mxu0 0
      %1396 = vmatpush1.bf16.msra.mxu0 0
      %1397 = vmatprep.subr.bf16.mxu0 0
      %1398 = vmatpush1.bf16.msra.mxu0 0
      %1399 = vmatprep.subr.bf16.mxu0 0
      %1400 = vmatpush1.bf16.msra.mxu0 0
      %1401 = vmatprep.subr.bf16.mxu0 0
      %1402 = vmatpush1.bf16.msra.mxu0 0
      %1403 = vmatprep.subr.bf16.mxu0 0
      %1404 = vmatpush1.bf16.msra.mxu0 0
      %1405 = vmatprep.mubr.bf16.mxu0 0
      %1406 = vmatmul.mubr.bf16.gmra.mrb[0].mxu0 %v1362
      %v1407 = vpop.f32.mrb[0].mxu0
      %v1408 = vadd.f32 0.0, %v1407
      %v1409 = vpop.f32.mrb[0].mxu0
      %v1410 = vpop.f32.mrb[0].mxu0
      %v1411 = vadd.f32 0.0, %v1410
      %v1412 = vpop.f32.mrb[0].mxu0
      %1413 = vmatprep.mubr.bf16.mxu0 0
      %1414 = vmatmul.mubr.bf16.gmra.mrb[0].mxu0 %v1365
      %v1415 = vpop.f32.mrb[0].mxu0
      %v1416 = vadd.f32 0.0, %v1415
      %v1417 = vpop.f32.mrb[0].mxu0
      %v1418 = vpop.f32.mrb[0].mxu0
      %v1419 = vadd.f32 0.0, %v1418
      %v1420 = vpop.f32.mrb[0].mxu0
      %1421 = vmatprep.mubr.bf16.mxu0 0
      %1422 = vmatmul.mubr.bf16.gmra.mrb[0].mxu0 %v1368
      %v1423 = vpop.f32.mrb[0].mxu0
      %v1424 = vadd.f32 0.0, %v1423
      %v1425 = vpop.f32.mrb[0].mxu0
      %v1426 = vpop.f32.mrb[0].mxu0
      %v1427 = vadd.f32 0.0, %v1426
      %v1428 = vpop.f32.mrb[0].mxu0
      %1429 = vmatprep.mubr.bf16.mxu0 0
      %1430 = vmatmul.mubr.bf16.gmra.mrb[0].mxu0 %v1371
      %v1431 = vpop.f32.mrb[0].mxu0
      %v1432 = vadd.f32 0.0, %v1431
      %v1433 = vpop.f32.mrb[0].mxu0
      %v1434 = vpop.f32.mrb[0].mxu0
      %v1435 = vadd.f32 0.0, %v1434
      %v1436 = vpop.f32.mrb[0].mxu0
      %1437 = vdwg.mxu0
      %v1438 = vmax.f32 %v1345, %v1408
      %v1439 = vmax.f32 %v1346, %v1411
      %v1440 = vmax.f32 %v1347, %v1416
      %v1441 = vmax.f32 %v1348, %v1419
      %v1442 = vmax.f32 %v1349, %v1424
      %v1443 = vmax.f32 %v1350, %v1427
      %v1444 = vmax.f32 %v1351, %v1432
      %v1445 = vmax.f32 %v1352, %v1435
      %1446 = vrot.lane.b32.xlu0 %v415, 40
      %v1447 = vpop.permute.xlu0 %1446
      %1448 = vrot.lane.b32.xlu0 %v416, 40
      %v1449 = vpop.permute.xlu0 %1448
      %1450 = vrot.lane.b32.xlu0 %v417, 40
      %v1451 = vpop.permute.xlu0 %1450
      %1452 = vrot.lane.b32.xlu0 %v418, 40
      %v1453 = vpop.permute.xlu0 %1452
      %v1455 = vsel %vm434, %v1447, 0
      %v1458 = vsel %vm434, %v1449, 0
      %v1461 = vsel %vm434, %v1451, 0
      %v1464 = vsel %vm434, %v1453, 0
      %1466 = vmatprep.subr.bf16.mxu0 0
      %1467 = vmatpush1.bf16.msra.mxu0 %v429
      %1468 = vmatprep.subr.bf16.mxu0 0
      %1469 = vmatpush1.bf16.msra.mxu0 %v430
      %1470 = vmatprep.subr.bf16.mxu0 0
      %1471 = vmatpush1.bf16.msra.mxu0 %v449
      %1472 = vmatprep.subr.bf16.mxu0 0
      %1473 = vmatpush1.bf16.msra.mxu0 0
      %1474 = vmatprep.subr.bf16.mxu0 0
      %1475 = vmatpush1.bf16.msra.mxu0 0
      %1476 = vmatprep.subr.bf16.mxu0 0
      %1477 = vmatpush1.bf16.msra.mxu0 0
      %1478 = vmatprep.subr.bf16.mxu0 0
      %1479 = vmatpush1.bf16.msra.mxu0 0
      %1480 = vmatprep.subr.bf16.mxu0 0
      %1481 = vmatpush1.bf16.msra.mxu0 0
      %1482 = vmatprep.subr.bf16.mxu0 0
      %1483 = vmatpush1.bf16.msra.mxu0 0
      %1484 = vmatprep.subr.bf16.mxu0 0
      %1485 = vmatpush1.bf16.msra.mxu0 0
      %1486 = vmatprep.subr.bf16.mxu0 0
      %1487 = vmatpush1.bf16.msra.mxu0 0
      %1488 = vmatprep.subr.bf16.mxu0 0
      %1489 = vmatpush1.bf16.msra.mxu0 0
      %1490 = vmatprep.subr.bf16.mxu0 0
      %1491 = vmatpush1.bf16.msra.mxu0 0
      %1492 = vmatprep.subr.bf16.mxu0 0
      %1493 = vmatpush1.bf16.msra.mxu0 0
      %1494 = vmatprep.subr.bf16.mxu0 0
      %1495 = vmatpush1.bf16.msra.mxu0 0
      %1496 = vmatprep.subr.bf16.mxu0 0
      %1497 = vmatpush1.bf16.msra.mxu0 0
      %1498 = vmatprep.mubr.bf16.mxu0 0
      %1499 = vmatmul.mubr.bf16.gmra.mrb[0].mxu0 %v1455
      %v1500 = vpop.f32.mrb[0].mxu0
      %v1501 = vadd.f32 0.0, %v1500
      %v1502 = vpop.f32.mrb[0].mxu0
      %v1503 = vpop.f32.mrb[0].mxu0
      %v1504 = vadd.f32 0.0, %v1503
      %v1505 = vpop.f32.mrb[0].mxu0
      %1506 = vmatprep.mubr.bf16.mxu0 0
      %1507 = vmatmul.mubr.bf16.gmra.mrb[0].mxu0 %v1458
      %v1508 = vpop.f32.mrb[0].mxu0
      %v1509 = vadd.f32 0.0, %v1508
      %v1510 = vpop.f32.mrb[0].mxu0
      %v1511 = vpop.f32.mrb[0].mxu0
      %v1512 = vadd.f32 0.0, %v1511
      %v1513 = vpop.f32.mrb[0].mxu0
      %1514 = vmatprep.mubr.bf16.mxu0 0
      %1515 = vmatmul.mubr.bf16.gmra.mrb[0].mxu0 %v1461
      %v1516 = vpop.f32.mrb[0].mxu0
      %v1517 = vadd.f32 0.0, %v1516
      %v1518 = vpop.f32.mrb[0].mxu0
      %v1519 = vpop.f32.mrb[0].mxu0
      %v1520 = vadd.f32 0.0, %v1519
      %v1521 = vpop.f32.mrb[0].mxu0
      %1522 = vmatprep.mubr.bf16.mxu0 0
      %1523 = vmatmul.mubr.bf16.gmra.mrb[0].mxu0 %v1464
      %v1524 = vpop.f32.mrb[0].mxu0
      %v1525 = vadd.f32 0.0, %v1524
      %v1526 = vpop.f32.mrb[0].mxu0
      %v1527 = vpop.f32.mrb[0].mxu0
      %v1528 = vadd.f32 0.0, %v1527
      %v1529 = vpop.f32.mrb[0].mxu0
      %1530 = vdwg.mxu0
      %v1531 = vmax.f32 %v1438, %v1501
      %v1532 = vmax.f32 %v1439, %v1504
      %v1533 = vmax.f32 %v1440, %v1509
      %v1534 = vmax.f32 %v1441, %v1512
      %v1535 = vmax.f32 %v1442, %v1517
      %v1536 = vmax.f32 %v1443, %v1520
      %v1537 = vmax.f32 %v1444, %v1525
      %v1538 = vmax.f32 %v1445, %v1528
      %v1539 = vld [vmem:[%s5] sm:$0x1]
      %v1541 = vlaneseq
      %v1542 = vshrl.u32 %v1541, 7
      %v1543 = vsub.s32 0, %v1542
      %v1544 = vrot.slane %v1539, %v1543
      %v1546 = vadd.f32 %v1531, %v1544
      %v1547 = vadd.f32 %v1532, %v1544
      %v1548 = vadd.f32 %v1533, %v1544
      %v1549 = vadd.f32 %v1534, %v1544
      %v1550 = vadd.f32 %v1535, %v1544
      %v1551 = vadd.f32 %v1536, %v1544
      %v1552 = vadd.f32 %v1537, %v1544
      %v1553 = vadd.f32 %v1538, %v1544
      %v1554 = vmax.f32 %v1546, 0.0
      %v1555 = vmax.f32 %v1547, 0.0
      %v1556 = vmax.f32 %v1548, 0.0
      %v1557 = vmax.f32 %v1549, 0.0
      %v1558 = vmax.f32 %v1550, 0.0
      %v1559 = vmax.f32 %v1551, 0.0
      %v1560 = vmax.f32 %v1552, 0.0
      %v1561 = vmax.f32 %v1553, 0.0
      %v1562 = vld [vmem:[%s371] sm:$0xf]
      %v1563 = vld [vmem:[%s371 + $0x4] sm:$0xf]
      %v1564 = vld [vmem:[%s371 + $0x8] sm:$0xf]
      %v1565 = vld [vmem:[%s371 + $0xc] sm:$0xf]
      %v1566 = vld [vmem:[%s371 + $0x10] sm:$0xf]
      %v1567 = vld [vmem:[%s371 + $0x14] sm:$0xf]
      %v1568 = vld [vmem:[%s371 + $0x18] sm:$0xf]
      %v1569 = vld [vmem:[%s371 + $0x1c] sm:$0xf]
      %v1570 = vld [vmem:[%s2] sm:$0xf]
      %v1571 = vld [vmem:[%s2 + $0x4] sm:$0xf]
      %v1572 = vld [vmem:[%s2 + $0x8] sm:$0xf]
      %v1573 = vld [vmem:[%s2 + $0xc] sm:$0xf]
      %v1574 = vld [vmem:[%s2 + $0x10] sm:$0xf]
      %v1575 = vld [vmem:[%s2 + $0x14] sm:$0x7]
      %v1576 = vpack.c.bf16 %v1555, %v1554
      %v1577 = vpack.c.bf16 %v1557, %v1556
      %v1578 = vpack.c.bf16 %v1559, %v1558
      %v1579 = vpack.c.bf16 %v1561, %v1560
      %v1580 = vld [vmem:[%s3] sm:$0xf]
      %v1581 = vld [vmem:[%s3 + $0x4] sm:$0xf]
      %v1582 = vld [vmem:[%s3 + $0x8] sm:$0xf]
      %v1583 = vld [vmem:[%s3 + $0xc] sm:$0xf]
      %v1584 = vld [vmem:[%s3 + $0x10] sm:$0xf]
      %v1585 = vld [vmem:[%s3 + $0x14] sm:$0xf]
      %v1586 = vld [vmem:[%s3 + $0x18] sm:$0xf]
      %v1587 = vld [vmem:[%s3 + $0x1c] sm:$0xf]
      %v1588 = vld [vmem:[%s3 + $0x20] sm:$0xf]
      %v1589 = vld [vmem:[%s3 + $0x24] sm:$0xf]
      %v1590 = vld [vmem:[%s3 + $0x28] sm:$0xf]
      %v1591 = vld [vmem:[%s3 + $0x2c] sm:$0xf]
      %v1592 = vld [vmem:[%s3 + $0x30] sm:$0xf]
      %v1593 = vld [vmem:[%s3 + $0x34] sm:$0xf]
      %v1594 = vld [vmem:[%s3 + $0x38] sm:$0xf]
      %v1595 = vld [vmem:[%s3 + $0x3c] sm:$0xf]
      %v1612 = vunpack.c.l.b16 %v1580
      %v1613 = vunpack.c.l.b16 %v1581
      %v1614 = vunpack.c.l.b16 %v1582
      %v1615 = vunpack.c.l.b16 %v1583
      %v1616 = vunpack.c.l.b16 %v1584
      %v1617 = vunpack.c.l.b16 %v1585
      %v1618 = vunpack.c.l.b16 %v1586
      %v1619 = vunpack.c.l.b16 %v1587
      %v1620 = vunpack.c.l.b16 %v1588
      %v1621 = vunpack.c.l.b16 %v1589
      %v1622 = vunpack.c.l.b16 %v1590
      %v1623 = vunpack.c.l.b16 %v1591
      %v1624 = vunpack.c.l.b16 %v1592
      %v1625 = vunpack.c.l.b16 %v1593
      %v1626 = vunpack.c.l.b16 %v1594
      %v1627 = vunpack.c.l.b16 %v1595
      %v1628 = vpack.c.b16 %v1613, %v1612
      %v1629 = vpack.c.b16 %v1615, %v1614
      %v1630 = vpack.c.b16 %v1617, %v1616
      %v1631 = vpack.c.b16 %v1619, %v1618
      %v1632 = vpack.c.b16 %v1621, %v1620
      %v1633 = vpack.c.b16 %v1623, %v1622
      %v1634 = vpack.c.b16 %v1625, %v1624
      %v1635 = vpack.c.b16 %v1627, %v1626
      %1644 = vmatprep.subr.bf16.mxu0 0
      %1645 = vmatpush1.bf16.msra.mxu0 %v1628
      %1646 = vmatprep.subr.bf16.mxu0 0
      %1647 = vmatpush1.bf16.msra.mxu0 %v1629
      %1648 = vmatprep.subr.bf16.mxu0 0
      %1649 = vmatpush1.bf16.msra.mxu0 %v1630
      %1650 = vmatprep.subr.bf16.mxu0 0
      %1651 = vmatpush1.bf16.msra.mxu0 %v1631
      %1652 = vmatprep.subr.bf16.mxu0 0
      %1653 = vmatpush1.bf16.msra.mxu0 %v1632
      %1654 = vmatprep.subr.bf16.mxu0 0
      %1655 = vmatpush1.bf16.msra.mxu0 %v1633
      %1656 = vmatprep.subr.bf16.mxu0 0
      %1657 = vmatpush1.bf16.msra.mxu0 %v1634
      %1658 = vmatprep.subr.bf16.mxu0 0
      %1659 = vmatpush1.bf16.msra.mxu0 %v1635
      %1660 = vmatprep.subr.bf16.mxu0 0
      %1661 = vmatpush1.bf16.msra.mxu0 0
      %1662 = vmatprep.subr.bf16.mxu0 0
      %1663 = vmatpush1.bf16.msra.mxu0 0
      %1664 = vmatprep.subr.bf16.mxu0 0
      %1665 = vmatpush1.bf16.msra.mxu0 0
      %1666 = vmatprep.subr.bf16.mxu0 0
      %1667 = vmatpush1.bf16.msra.mxu0 0
      %1668 = vmatprep.subr.bf16.mxu0 0
      %1669 = vmatpush1.bf16.msra.mxu0 0
      %1670 = vmatprep.subr.bf16.mxu0 0
      %1671 = vmatpush1.bf16.msra.mxu0 0
      %1672 = vmatprep.subr.bf16.mxu0 0
      %1673 = vmatpush1.bf16.msra.mxu0 0
      %1674 = vmatprep.subr.bf16.mxu0 0
      %1675 = vmatpush1.bf16.msra.mxu0 0
      %1676 = vmatprep.mubr.bf16.mxu0 0
      %1677 = vmatmul.mubr.bf16.gmra.mrb[0].mxu0 %v1576
      %v1678 = vpop.f32.mrb[0].mxu0
      %v1679 = vadd.f32 0.0, %v1678
      %v1680 = vpop.f32.mrb[0].mxu0
      %v1681 = vpop.f32.mrb[0].mxu0
      %v1682 = vadd.f32 0.0, %v1681
      %v1683 = vpop.f32.mrb[0].mxu0
      %1684 = vmatprep.mubr.bf16.mxu0 0
      %1685 = vmatmul.mubr.bf16.gmra.mrb[0].mxu0 %v1577
      %v1686 = vpop.f32.mrb[0].mxu0
      %v1687 = vadd.f32 0.0, %v1686
      %v1688 = vpop.f32.mrb[0].mxu0
      %v1689 = vpop.f32.mrb[0].mxu0
      %v1690 = vadd.f32 0.0, %v1689
      %v1691 = vpop.f32.mrb[0].mxu0
      %1692 = vmatprep.mubr.bf16.mxu0 0
      %1693 = vmatmul.mubr.bf16.gmra.mrb[0].mxu0 %v1578
      %v1694 = vpop.f32.mrb[0].mxu0
      %v1695 = vadd.f32 0.0, %v1694
      %v1696 = vpop.f32.mrb[0].mxu0
      %v1697 = vpop.f32.mrb[0].mxu0
      %v1698 = vadd.f32 0.0, %v1697
      %v1699 = vpop.f32.mrb[0].mxu0
      %1700 = vmatprep.mubr.bf16.mxu0 0
      %1701 = vmatmul.mubr.bf16.gmra.mrb[0].mxu0 %v1579
      %v1702 = vpop.f32.mrb[0].mxu0
      %v1703 = vadd.f32 0.0, %v1702
      %v1704 = vpop.f32.mrb[0].mxu0
      %v1705 = vpop.f32.mrb[0].mxu0
      %v1706 = vadd.f32 0.0, %v1705
      %v1707 = vpop.f32.mrb[0].mxu0
      %1708 = vdwg.mxu0
      %v1717 = vunpack.c.l.b16 %v1562
      %v1718 = vunpack.c.l.b16 %v1563
      %v1719 = vunpack.c.l.b16 %v1564
      %v1720 = vunpack.c.l.b16 %v1565
      %v1721 = vunpack.c.l.b16 %v1566
      %v1722 = vunpack.c.l.b16 %v1567
      %v1723 = vunpack.c.l.b16 %v1568
      %v1724 = vunpack.c.l.b16 %v1569
      %v1725 = vpack.c.b16 %v1718, %v1717
      %v1726 = vpack.c.b16 %v1720, %v1719
      %v1727 = vpack.c.b16 %v1722, %v1721
      %v1728 = vpack.c.b16 %v1724, %v1723
      %v1735 = vunpack.c.l.b16 %v1570
      %v1736 = vunpack.c.l.b16 %v1571
      %v1737 = vunpack.c.l.b16 %v1572
      %v1738 = vunpack.c.l.b16 %v1573
      %v1739 = vunpack.c.l.b16 %v1574
      %v1740 = vunpack.c.l.b16 %v1575
      %v1741 = vpack.c.b16 %v1736, %v1735
      %v1742 = vpack.c.b16 %v1738, %v1737
      %v1743 = vpack.c.b16 %v1740, %v1739
      %vm1746 = vcmask 375808
      %v1748 = vsel %vm1746, %v1725, 0
      %v1751 = vsel %vm1746, %v1726, 0
      %v1754 = vsel %vm1746, %v1727, 0
      %v1757 = vsel %vm1746, %v1728, 0
      %vm1759 = vcmask 1046528
      %v1761 = vsel %vm1759, %v1743, 0
      %1763 = vmatprep.subr.bf16.mxu0 0
      %1764 = vmatpush1.bf16.msra.mxu0 %v1741
      %1765 = vmatprep.subr.bf16.mxu0 0
      %1766 = vmatpush1.bf16.msra.mxu0 %v1742
      %1767 = vmatprep.subr.bf16.mxu0 0
      %1768 = vmatpush1.bf16.msra.mxu0 %v1761
      %1769 = vmatprep.subr.bf16.mxu0 0
      %1770 = vmatpush1.bf16.msra.mxu0 0
      %1771 = vmatprep.subr.bf16.mxu0 0
      %1772 = vmatpush1.bf16.msra.mxu0 0
      %1773 = vmatprep.subr.bf16.mxu0 0
      %1774 = vmatpush1.bf16.msra.mxu0 0
      %1775 = vmatprep.subr.bf16.mxu0 0
      %1776 = vmatpush1.bf16.msra.mxu0 0
      %1777 = vmatprep.subr.bf16.mxu0 0
      %1778 = vmatpush1.bf16.msra.mxu0 0
      %1779 = vmatprep.subr.bf16.mxu0 0
      %1780 = vmatpush1.bf16.msra.mxu0 0
      %1781 = vmatprep.subr.bf16.mxu0 0
      %1782 = vmatpush1.bf16.msra.mxu0 0
      %1783 = vmatprep.subr.bf16.mxu0 0
      %1784 = vmatpush1.bf16.msra.mxu0 0
      %1785 = vmatprep.subr.bf16.mxu0 0
      %1786 = vmatpush1.bf16.msra.mxu0 0
      %1787 = vmatprep.subr.bf16.mxu0 0
      %1788 = vmatpush1.bf16.msra.mxu0 0
      %1789 = vmatprep.subr.bf16.mxu0 0
      %1790 = vmatpush1.bf16.msra.mxu0 0
      %1791 = vmatprep.subr.bf16.mxu0 0
      %1792 = vmatpush1.bf16.msra.mxu0 0
      %1793 = vmatprep.subr.bf16.mxu0 0
      %1794 = vmatpush1.bf16.msra.mxu0 0
      %1795 = vmatprep.mubr.bf16.mxu0 0
      %1796 = vmatmul.mubr.bf16.gmra.mrb[0].mxu0 %v1748
      %v1797 = vpop.f32.mrb[0].mxu0
      %v1798 = vadd.f32 %v1679, %v1797
      %v1799 = vpop.f32.mrb[0].mxu0
      %v1800 = vpop.f32.mrb[0].mxu0
      %v1801 = vadd.f32 %v1682, %v1800
      %v1802 = vpop.f32.mrb[0].mxu0
      %1803 = vmatprep.mubr.bf16.mxu0 0
      %1804 = vmatmul.mubr.bf16.gmra.mrb[0].mxu0 %v1751
      %v1805 = vpop.f32.mrb[0].mxu0
      %v1806 = vadd.f32 %v1687, %v1805
      %v1807 = vpop.f32.mrb[0].mxu0
      %v1808 = vpop.f32.mrb[0].mxu0
      %v1809 = vadd.f32 %v1690, %v1808
      %v1810 = vpop.f32.mrb[0].mxu0
      %1811 = vmatprep.mubr.bf16.mxu0 0
      %1812 = vmatmul.mubr.bf16.gmra.mrb[0].mxu0 %v1754
      %v1813 = vpop.f32.mrb[0].mxu0
      %v1814 = vadd.f32 %v1695, %v1813
      %v1815 = vpop.f32.mrb[0].mxu0
      %v1816 = vpop.f32.mrb[0].mxu0
      %v1817 = vadd.f32 %v1698, %v1816
      %v1818 = vpop.f32.mrb[0].mxu0
      %1819 = vmatprep.mubr.bf16.mxu0 0
      %1820 = vmatmul.mubr.bf16.gmra.mrb[0].mxu0 %v1757
      %v1821 = vpop.f32.mrb[0].mxu0
      %v1822 = vadd.f32 %v1703, %v1821
      %v1823 = vpop.f32.mrb[0].mxu0
      %v1824 = vpop.f32.mrb[0].mxu0
      %v1825 = vadd.f32 %v1706, %v1824
      %v1826 = vpop.f32.mrb[0].mxu0
      %1827 = vdwg.mxu0
      %v1828 = vpack.c.bf16 %v1801, %v1798
      %v1829 = vpack.c.bf16 %v1809, %v1806
      %v1830 = vpack.c.bf16 %v1817, %v1814
      %v1831 = vpack.c.bf16 %v1825, %v1822
      %v1832 = vld [vmem:[%s6] sm:$0xff]
      %v1833 = vld [vmem:[%s6 + $0x8] sm:$0xff]
      %v1834 = vld [vmem:[%s6 + $0x10] sm:$0xff]
      %v1835 = vld [vmem:[%s6 + $0x18] sm:$0xff]
      %v1836 = vld [vmem:[%s6 + $0x20] sm:$0xff]
      %v1837 = vld [vmem:[%s6 + $0x28] sm:$0xff]
      %v1838 = vld [vmem:[%s6 + $0x30] sm:$0xff]
      %v1839 = vld [vmem:[%s6 + $0x38] sm:$0xff]
      %v1840 = vld [vmem:[%s6 + $0x40] sm:$0xff]
      %v1841 = vld [vmem:[%s6 + $0x48] sm:$0xff]
      %v1842 = vld [vmem:[%s6 + $0x50] sm:$0xff]
      %v1843 = vld [vmem:[%s6 + $0x58] sm:$0xff]
      %v1844 = vld [vmem:[%s6 + $0x60] sm:$0xff]
      %v1845 = vld [vmem:[%s6 + $0x68] sm:$0xff]
      %v1846 = vld [vmem:[%s6 + $0x70] sm:$0xff]
      %v1847 = vld [vmem:[%s6 + $0x78] sm:$0xff]
      %v1848 = vld [vmem:[%s7] sm:$0x3]
      %v1850 = vlaneseq
      %v1851 = vshrl.u32 %v1850, 7
      %v1852 = vsub.s32 0, %v1851
      %v1853 = vrot.slane %v1848, %v1852
      %v1854 = vlaneseq
      %v1855 = vshrl.u32 %v1854, 7
      %v1856 = vsub.s32 1, %v1855
      %v1857 = vrot.slane %v1848, %v1856
      %v1876 = vunpack.c.l.b16 %v1832
      %v1877 = vunpack.c.h.b16 %v1832
      %v1878 = vunpack.c.l.b16 %v1833
      %v1879 = vunpack.c.h.b16 %v1833
      %v1880 = vunpack.c.l.b16 %v1834
      %v1881 = vunpack.c.h.b16 %v1834
      %v1882 = vunpack.c.l.b16 %v1835
      %v1883 = vunpack.c.h.b16 %v1835
      %v1884 = vunpack.c.l.b16 %v1836
      %v1885 = vunpack.c.h.b16 %v1836
      %v1886 = vunpack.c.l.b16 %v1837
      %v1887 = vunpack.c.h.b16 %v1837
      %v1888 = vunpack.c.l.b16 %v1838
      %v1889 = vunpack.c.h.b16 %v1838
      %v1890 = vunpack.c.l.b16 %v1839
      %v1891 = vunpack.c.h.b16 %v1839
      %v1892 = vunpack.c.l.b16 %v1840
      %v1893 = vunpack.c.h.b16 %v1840
      %v1894 = vunpack.c.l.b16 %v1841
      %v1895 = vunpack.c.h.b16 %v1841
      %v1896 = vunpack.c.l.b16 %v1842
      %v1897 = vunpack.c.h.b16 %v1842
      %v1898 = vunpack.c.l.b16 %v1843
      %v1899 = vunpack.c.h.b16 %v1843
      %v1900 = vunpack.c.l.b16 %v1844
      %v1901 = vunpack.c.h.b16 %v1844
      %v1902 = vunpack.c.l.b16 %v1845
      %v1903 = vunpack.c.h.b16 %v1845
      %v1904 = vunpack.c.l.b16 %v1846
      %v1905 = vunpack.c.h.b16 %v1846
      %v1906 = vunpack.c.l.b16 %v1847
      %v1907 = vunpack.c.h.b16 %v1847
      %v1908 = vpack.c.b16 %v1878, %v1876
      %v1909 = vpack.c.b16 %v1879, %v1877
      %v1910 = vpack.c.b16 %v1882, %v1880
      %v1911 = vpack.c.b16 %v1883, %v1881
      %v1912 = vpack.c.b16 %v1886, %v1884
      %v1913 = vpack.c.b16 %v1887, %v1885
      %v1914 = vpack.c.b16 %v1890, %v1888
      %v1915 = vpack.c.b16 %v1891, %v1889
      %v1916 = vpack.c.b16 %v1894, %v1892
      %v1917 = vpack.c.b16 %v1895, %v1893
      %v1918 = vpack.c.b16 %v1898, %v1896
      %v1919 = vpack.c.b16 %v1899, %v1897
      %v1920 = vpack.c.b16 %v1902, %v1900
      %v1921 = vpack.c.b16 %v1903, %v1901
      %v1922 = vpack.c.b16 %v1906, %v1904
      %v1923 = vpack.c.b16 %v1907, %v1905
      %1940 = vmatprep.subr.bf16.mxu0 %v1909
      %1941 = vmatpush1.bf16.msra.mxu0 %v1908
      %1942 = vmatprep.subr.bf16.mxu0 %v1911
      %1943 = vmatpush1.bf16.msra.mxu0 %v1910
      %1944 = vmatprep.subr.bf16.mxu0 %v1913
      %1945 = vmatpush1.bf16.msra.mxu0 %v1912
      %1946 = vmatprep.subr.bf16.mxu0 %v1915
      %1947 = vmatpush1.bf16.msra.mxu0 %v1914
      %1948 = vmatprep.subr.bf16.mxu0 %v1917
      %1949 = vmatpush1.bf16.msra.mxu0 %v1916
      %1950 = vmatprep.subr.bf16.mxu0 %v1919
      %1951 = vmatpush1.bf16.msra.mxu0 %v1918
      %1952 = vmatprep.subr.bf16.mxu0 %v1921
      %1953 = vmatpush1.bf16.msra.mxu0 %v1920
      %1954 = vmatprep.subr.bf16.mxu0 %v1923
      %1955 = vmatpush1.bf16.msra.mxu0 %v1922
      %1956 = vmatprep.subr.bf16.mxu0 0
      %1957 = vmatpush1.bf16.msra.mxu0 0
      %1958 = vmatprep.subr.bf16.mxu0 0
      %1959 = vmatpush1.bf16.msra.mxu0 0
      %1960 = vmatprep.subr.bf16.mxu0 0
      %1961 = vmatpush1.bf16.msra.mxu0 0
      %1962 = vmatprep.subr.bf16.mxu0 0
      %1963 = vmatpush1.bf16.msra.mxu0 0
      %1964 = vmatprep.subr.bf16.mxu0 0
      %1965 = vmatpush1.bf16.msra.mxu0 0
      %1966 = vmatprep.subr.bf16.mxu0 0
      %1967 = vmatpush1.bf16.msra.mxu0 0
      %1968 = vmatprep.subr.bf16.mxu0 0
      %1969 = vmatpush1.bf16.msra.mxu0 0
      %1970 = vmatprep.subr.bf16.mxu0 0
      %1971 = vmatpush1.bf16.msra.mxu0 0
      %1972 = vmatprep.mubr.bf16.mxu0 0
      %1973 = vmatmul.mubr.bf16.gmra.mrb[0].mxu0 %v1828
      %v1974 = vpop.f32.mrb[0].mxu0
      %v1975 = vadd.f32 %v1853, %v1974
      %v1976 = vpop.f32.mrb[0].mxu0
      %v1977 = vadd.f32 %v1857, %v1976
      %v1978 = vpop.f32.mrb[0].mxu0
      %v1979 = vadd.f32 %v1853, %v1978
      %v1980 = vpop.f32.mrb[0].mxu0
      %v1981 = vadd.f32 %v1857, %v1980
      %1982 = vmatprep.mubr.bf16.mxu0 0
      %1983 = vmatmul.mubr.bf16.gmra.mrb[0].mxu0 %v1829
      %v1984 = vpop.f32.mrb[0].mxu0
      %v1985 = vadd.f32 %v1853, %v1984
      %v1986 = vpop.f32.mrb[0].mxu0
      %v1987 = vadd.f32 %v1857, %v1986
      %v1988 = vpop.f32.mrb[0].mxu0
      %v1989 = vadd.f32 %v1853, %v1988
      %v1990 = vpop.f32.mrb[0].mxu0
      %v1991 = vadd.f32 %v1857, %v1990
      %1992 = vmatprep.mubr.bf16.mxu0 0
      %1993 = vmatmul.mubr.bf16.gmra.mrb[0].mxu0 %v1830
      %v1994 = vpop.f32.mrb[0].mxu0
      %v1995 = vadd.f32 %v1853, %v1994
      %v1996 = vpop.f32.mrb[0].mxu0
      %v1997 = vadd.f32 %v1857, %v1996
      %v1998 = vpop.f32.mrb[0].mxu0
      %v1999 = vadd.f32 %v1853, %v1998
      %v2000 = vpop.f32.mrb[0].mxu0
      %v2001 = vadd.f32 %v1857, %v2000
      %2002 = vmatprep.mubr.bf16.mxu0 0
      %2003 = vmatmul.mubr.bf16.gmra.mrb[0].mxu0 %v1831
      %v2004 = vpop.f32.mrb[0].mxu0
      %v2005 = vadd.f32 %v1853, %v2004
      %v2006 = vpop.f32.mrb[0].mxu0
      %v2007 = vadd.f32 %v1857, %v2006
      %v2008 = vpop.f32.mrb[0].mxu0
      %v2009 = vadd.f32 %v1853, %v2008
      %v2010 = vpop.f32.mrb[0].mxu0
      %v2011 = vadd.f32 %v1857, %v2010
      %2012 = vdwg.mxu0
      %v2013 = vxor.u32 %v1975, 2147483648
      %v2014 = vxor.u32 %v1979, 2147483648
      %v2015 = vxor.u32 %v1985, 2147483648
      %v2016 = vxor.u32 %v1989, 2147483648
      %v2017 = vxor.u32 %v1995, 2147483648
      %v2018 = vxor.u32 %v1999, 2147483648
      %v2019 = vxor.u32 %v2005, 2147483648
      %v2020 = vxor.u32 %v2009, 2147483648
      %v2021 = vmul.f32 %v2013, 1.442695
      %v2022 = vpow.pop %v2021
      %v2023 = vmul.f32 %v2014, 1.442695
      %v2024 = vpow.pop %v2023
      %v2025 = vmul.f32 %v2015, 1.442695
      %v2026 = vpow.pop %v2025
      %v2027 = vmul.f32 %v2016, 1.442695
      %v2028 = vpow.pop %v2027
      %v2029 = vmul.f32 %v2017, 1.442695
      %v2030 = vpow.pop %v2029
      %v2031 = vmul.f32 %v2018, 1.442695
      %v2032 = vpow.pop %v2031
      %v2033 = vmul.f32 %v2019, 1.442695
      %v2034 = vpow.pop %v2033
      %v2035 = vmul.f32 %v2020, 1.442695
      %v2036 = vpow.pop %v2035
      %v2037 = vadd.f32 %v2022, 1.0
      %v2038 = vadd.f32 %v2024, 1.0
      %v2039 = vadd.f32 %v2026, 1.0
      %v2040 = vadd.f32 %v2028, 1.0
      %v2041 = vadd.f32 %v2030, 1.0
      %v2042 = vadd.f32 %v2032, 1.0
      %v2043 = vadd.f32 %v2034, 1.0
      %v2044 = vadd.f32 %v2036, 1.0
      %v2045 = vrcp.pop %v2037
      %v2046 = vmul.f32 1.0, %v2045
      %v2047 = vrcp.pop %v2038
      %v2048 = vmul.f32 1.0, %v2047
      %v2049 = vrcp.pop %v2039
      %v2050 = vmul.f32 1.0, %v2049
      %v2051 = vrcp.pop %v2040
      %v2052 = vmul.f32 1.0, %v2051
      %v2053 = vrcp.pop %v2041
      %v2054 = vmul.f32 1.0, %v2053
      %v2055 = vrcp.pop %v2042
      %v2056 = vmul.f32 1.0, %v2055
      %v2057 = vrcp.pop %v2043
      %v2058 = vmul.f32 1.0, %v2057
      %v2059 = vrcp.pop %v2044
      %v2060 = vmul.f32 1.0, %v2059
      %v2061 = vmax.f32 %v1977, 0.0
      %v2062 = vmax.f32 %v1981, 0.0
      %v2063 = vmax.f32 %v1987, 0.0
      %v2064 = vmax.f32 %v1991, 0.0
      %v2065 = vmax.f32 %v1997, 0.0
      %v2066 = vmax.f32 %v2001, 0.0
      %v2067 = vmax.f32 %v2007, 0.0
      %v2068 = vmax.f32 %v2011, 0.0
      %v2069 = vsub.f32 %v2061, %v1798
      %v2070 = vsub.f32 %v2062, %v1801
      %v2071 = vsub.f32 %v2063, %v1806
      %v2072 = vsub.f32 %v2064, %v1809
      %v2073 = vsub.f32 %v2065, %v1814
      %v2074 = vsub.f32 %v2066, %v1817
      %v2075 = vsub.f32 %v2067, %v1822
      %v2076 = vsub.f32 %v2068, %v1825
      %v2077 = vmul.f32 %v2046, %v2069
      %v2078 = vmul.f32 %v2048, %v2070
      %v2079 = vmul.f32 %v2050, %v2071
      %v2080 = vmul.f32 %v2052, %v2072
      %v2081 = vmul.f32 %v2054, %v2073
      %v2082 = vmul.f32 %v2056, %v2074
      %v2083 = vmul.f32 %v2058, %v2075
      %v2084 = vmul.f32 %v2060, %v2076
      %v2085 = vadd.f32 %v1798, %v2077
      %v2086 = vadd.f32 %v1801, %v2078
      %v2087 = vadd.f32 %v1806, %v2079
      %v2088 = vadd.f32 %v1809, %v2080
      %v2089 = vadd.f32 %v1814, %v2081
      %v2090 = vadd.f32 %v1817, %v2082
      %v2091 = vadd.f32 %v1822, %v2083
      %v2092 = vadd.f32 %v1825, %v2084
      %v2093 = vpack.c.bf16 %v2086, %v2085
      %v2094 = vpack.c.bf16 %v2088, %v2087
      %v2095 = vpack.c.bf16 %v2090, %v2089
      %v2096 = vpack.c.bf16 %v2092, %v2091
      %v2097 = vld [vmem:[%s8] sm:$0xff]
      %v2098 = vld [vmem:[%s8 + $0x8] sm:$0xff]
      %v2099 = vld [vmem:[%s8 + $0x10] sm:$0xff]
      %v2100 = vld [vmem:[%s8 + $0x18] sm:$0xff]
      %v2101 = vld [vmem:[%s8 + $0x20] sm:$0xff]
      %v2102 = vld [vmem:[%s8 + $0x28] sm:$0xff]
      %v2103 = vld [vmem:[%s8 + $0x30] sm:$0xff]
      %v2104 = vld [vmem:[%s8 + $0x38] sm:$0xff]
      %v2105 = vld [vmem:[%s8 + $0x40] sm:$0xff]
      %v2106 = vld [vmem:[%s8 + $0x48] sm:$0xff]
      %v2107 = vld [vmem:[%s8 + $0x50] sm:$0xff]
      %v2108 = vld [vmem:[%s8 + $0x58] sm:$0xff]
      %v2109 = vld [vmem:[%s8 + $0x60] sm:$0xff]
      %v2110 = vld [vmem:[%s8 + $0x68] sm:$0xff]
      %v2111 = vld [vmem:[%s8 + $0x70] sm:$0xff]
      %v2112 = vld [vmem:[%s8 + $0x78] sm:$0xff]
      %v2113 = vld [vmem:[%s9] sm:$0x3]
      %v2115 = vlaneseq
      %v2116 = vshrl.u32 %v2115, 7
      %v2117 = vsub.s32 0, %v2116
      %v2118 = vrot.slane %v2113, %v2117
      %v2119 = vlaneseq
      %v2120 = vshrl.u32 %v2119, 7
      %v2121 = vsub.s32 1, %v2120
      %v2122 = vrot.slane %v2113, %v2121
      %v2141 = vunpack.c.l.b16 %v2097
      %v2142 = vunpack.c.h.b16 %v2097
      %v2143 = vunpack.c.l.b16 %v2098
      %v2144 = vunpack.c.h.b16 %v2098
      %v2145 = vunpack.c.l.b16 %v2099
      %v2146 = vunpack.c.h.b16 %v2099
      %v2147 = vunpack.c.l.b16 %v2100
      %v2148 = vunpack.c.h.b16 %v2100
      %v2149 = vunpack.c.l.b16 %v2101
      %v2150 = vunpack.c.h.b16 %v2101
      %v2151 = vunpack.c.l.b16 %v2102
      %v2152 = vunpack.c.h.b16 %v2102
      %v2153 = vunpack.c.l.b16 %v2103
      %v2154 = vunpack.c.h.b16 %v2103
      %v2155 = vunpack.c.l.b16 %v2104
      %v2156 = vunpack.c.h.b16 %v2104
      %v2157 = vunpack.c.l.b16 %v2105
      %v2158 = vunpack.c.h.b16 %v2105
      %v2159 = vunpack.c.l.b16 %v2106
      %v2160 = vunpack.c.h.b16 %v2106
      %v2161 = vunpack.c.l.b16 %v2107
      %v2162 = vunpack.c.h.b16 %v2107
      %v2163 = vunpack.c.l.b16 %v2108
      %v2164 = vunpack.c.h.b16 %v2108
      %v2165 = vunpack.c.l.b16 %v2109
      %v2166 = vunpack.c.h.b16 %v2109
      %v2167 = vunpack.c.l.b16 %v2110
      %v2168 = vunpack.c.h.b16 %v2110
      %v2169 = vunpack.c.l.b16 %v2111
      %v2170 = vunpack.c.h.b16 %v2111
      %v2171 = vunpack.c.l.b16 %v2112
      %v2172 = vunpack.c.h.b16 %v2112
      %v2173 = vpack.c.b16 %v2143, %v2141
      %v2174 = vpack.c.b16 %v2144, %v2142
      %v2175 = vpack.c.b16 %v2147, %v2145
      %v2176 = vpack.c.b16 %v2148, %v2146
      %v2177 = vpack.c.b16 %v2151, %v2149
      %v2178 = vpack.c.b16 %v2152, %v2150
      %v2179 = vpack.c.b16 %v2155, %v2153
      %v2180 = vpack.c.b16 %v2156, %v2154
      %v2181 = vpack.c.b16 %v2159, %v2157
      %v2182 = vpack.c.b16 %v2160, %v2158
      %v2183 = vpack.c.b16 %v2163, %v2161
      %v2184 = vpack.c.b16 %v2164, %v2162
      %v2185 = vpack.c.b16 %v2167, %v2165
      %v2186 = vpack.c.b16 %v2168, %v2166
      %v2187 = vpack.c.b16 %v2171, %v2169
      %v2188 = vpack.c.b16 %v2172, %v2170
      %2205 = vmatprep.subr.bf16.mxu0 %v2174
      %2206 = vmatpush1.bf16.msra.mxu0 %v2173
      %2207 = vmatprep.subr.bf16.mxu0 %v2176
      %2208 = vmatpush1.bf16.msra.mxu0 %v2175
      %2209 = vmatprep.subr.bf16.mxu0 %v2178
      %2210 = vmatpush1.bf16.msra.mxu0 %v2177
      %2211 = vmatprep.subr.bf16.mxu0 %v2180
      %2212 = vmatpush1.bf16.msra.mxu0 %v2179
      %2213 = vmatprep.subr.bf16.mxu0 %v2182
      %2214 = vmatpush1.bf16.msra.mxu0 %v2181
      %2215 = vmatprep.subr.bf16.mxu0 %v2184
      %2216 = vmatpush1.bf16.msra.mxu0 %v2183
      %2217 = vmatprep.subr.bf16.mxu0 %v2186
      %2218 = vmatpush1.bf16.msra.mxu0 %v2185
      %2219 = vmatprep.subr.bf16.mxu0 %v2188
      %2220 = vmatpush1.bf16.msra.mxu0 %v2187
      %2221 = vmatprep.subr.bf16.mxu0 0
      %2222 = vmatpush1.bf16.msra.mxu0 0
      %2223 = vmatprep.subr.bf16.mxu0 0
      %2224 = vmatpush1.bf16.msra.mxu0 0
      %2225 = vmatprep.subr.bf16.mxu0 0
      %2226 = vmatpush1.bf16.msra.mxu0 0
      %2227 = vmatprep.subr.bf16.mxu0 0
      %2228 = vmatpush1.bf16.msra.mxu0 0
      %2229 = vmatprep.subr.bf16.mxu0 0
      %2230 = vmatpush1.bf16.msra.mxu0 0
      %2231 = vmatprep.subr.bf16.mxu0 0
      %2232 = vmatpush1.bf16.msra.mxu0 0
      %2233 = vmatprep.subr.bf16.mxu0 0
      %2234 = vmatpush1.bf16.msra.mxu0 0
      %2235 = vmatprep.subr.bf16.mxu0 0
      %2236 = vmatpush1.bf16.msra.mxu0 0
      %2237 = vmatprep.mubr.bf16.mxu0 0
      %2238 = vmatmul.mubr.bf16.gmra.mrb[0].mxu0 %v2093
      %v2239 = vpop.f32.mrb[0].mxu0
      %v2240 = vadd.f32 %v2118, %v2239
      %v2241 = vpop.f32.mrb[0].mxu0
      %v2242 = vadd.f32 %v2122, %v2241
      %v2243 = vpop.f32.mrb[0].mxu0
      %v2244 = vadd.f32 %v2118, %v2243
      %v2245 = vpop.f32.mrb[0].mxu0
      %v2246 = vadd.f32 %v2122, %v2245
      %2247 = vmatprep.mubr.bf16.mxu0 0
      %2248 = vmatmul.mubr.bf16.gmra.mrb[0].mxu0 %v2094
      %v2249 = vpop.f32.mrb[0].mxu0
      %v2250 = vadd.f32 %v2118, %v2249
      %v2251 = vpop.f32.mrb[0].mxu0
      %v2252 = vadd.f32 %v2122, %v2251
      %v2253 = vpop.f32.mrb[0].mxu0
      %v2254 = vadd.f32 %v2118, %v2253
      %v2255 = vpop.f32.mrb[0].mxu0
      %v2256 = vadd.f32 %v2122, %v2255
      %2257 = vmatprep.mubr.bf16.mxu0 0
      %2258 = vmatmul.mubr.bf16.gmra.mrb[0].mxu0 %v2095
      %v2259 = vpop.f32.mrb[0].mxu0
      %v2260 = vadd.f32 %v2118, %v2259
      %v2261 = vpop.f32.mrb[0].mxu0
      %v2262 = vadd.f32 %v2122, %v2261
      %v2263 = vpop.f32.mrb[0].mxu0
      %v2264 = vadd.f32 %v2118, %v2263
      %v2265 = vpop.f32.mrb[0].mxu0
      %v2266 = vadd.f32 %v2122, %v2265
      %2267 = vmatprep.mubr.bf16.mxu0 0
      %2268 = vmatmul.mubr.bf16.gmra.mrb[0].mxu0 %v2096
      %v2269 = vpop.f32.mrb[0].mxu0
      %v2270 = vadd.f32 %v2118, %v2269
      %v2271 = vpop.f32.mrb[0].mxu0
      %v2272 = vadd.f32 %v2122, %v2271
      %v2273 = vpop.f32.mrb[0].mxu0
      %v2274 = vadd.f32 %v2118, %v2273
      %v2275 = vpop.f32.mrb[0].mxu0
      %v2276 = vadd.f32 %v2122, %v2275
      %2277 = vdwg.mxu0
      %v2278 = vxor.u32 %v2240, 2147483648
      %v2279 = vxor.u32 %v2244, 2147483648
      %v2280 = vxor.u32 %v2250, 2147483648
      %v2281 = vxor.u32 %v2254, 2147483648
      %v2282 = vxor.u32 %v2260, 2147483648
      %v2283 = vxor.u32 %v2264, 2147483648
      %v2284 = vxor.u32 %v2270, 2147483648
      %v2285 = vxor.u32 %v2274, 2147483648
      %v2286 = vmul.f32 %v2278, 1.442695
      %v2287 = vpow.pop %v2286
      %v2288 = vmul.f32 %v2279, 1.442695
      %v2289 = vpow.pop %v2288
      %v2290 = vmul.f32 %v2280, 1.442695
      %v2291 = vpow.pop %v2290
      %v2292 = vmul.f32 %v2281, 1.442695
      %v2293 = vpow.pop %v2292
      %v2294 = vmul.f32 %v2282, 1.442695
      %v2295 = vpow.pop %v2294
      %v2296 = vmul.f32 %v2283, 1.442695
      %v2297 = vpow.pop %v2296
      %v2298 = vmul.f32 %v2284, 1.442695
      %v2299 = vpow.pop %v2298
      %v2300 = vmul.f32 %v2285, 1.442695
      %v2301 = vpow.pop %v2300
      %v2302 = vadd.f32 %v2287, 1.0
      %v2303 = vadd.f32 %v2289, 1.0
      %v2304 = vadd.f32 %v2291, 1.0
      %v2305 = vadd.f32 %v2293, 1.0
      %v2306 = vadd.f32 %v2295, 1.0
      %v2307 = vadd.f32 %v2297, 1.0
      %v2308 = vadd.f32 %v2299, 1.0
      %v2309 = vadd.f32 %v2301, 1.0
      %v2310 = vrcp.pop %v2302
      %v2311 = vmul.f32 1.0, %v2310
      %v2312 = vrcp.pop %v2303
      %v2313 = vmul.f32 1.0, %v2312
      %v2314 = vrcp.pop %v2304
      %v2315 = vmul.f32 1.0, %v2314
      %v2316 = vrcp.pop %v2305
      %v2317 = vmul.f32 1.0, %v2316
      %v2318 = vrcp.pop %v2306
      %v2319 = vmul.f32 1.0, %v2318
      %v2320 = vrcp.pop %v2307
      %v2321 = vmul.f32 1.0, %v2320
      %v2322 = vrcp.pop %v2308
      %v2323 = vmul.f32 1.0, %v2322
      %v2324 = vrcp.pop %v2309
      %v2325 = vmul.f32 1.0, %v2324
      %v2326 = vmax.f32 %v2242, 0.0
      %v2327 = vmax.f32 %v2246, 0.0
      %v2328 = vmax.f32 %v2252, 0.0
      %v2329 = vmax.f32 %v2256, 0.0
      %v2330 = vmax.f32 %v2262, 0.0
      %v2331 = vmax.f32 %v2266, 0.0
      %v2332 = vmax.f32 %v2272, 0.0
      %v2333 = vmax.f32 %v2276, 0.0
      %v2334 = vsub.f32 %v2326, %v2085
      %v2335 = vsub.f32 %v2327, %v2086
      %v2336 = vsub.f32 %v2328, %v2087
      %v2337 = vsub.f32 %v2329, %v2088
      %v2338 = vsub.f32 %v2330, %v2089
      %v2339 = vsub.f32 %v2331, %v2090
      %v2340 = vsub.f32 %v2332, %v2091
      %v2341 = vsub.f32 %v2333, %v2092
      %v2342 = vmul.f32 %v2311, %v2334
      %v2343 = vmul.f32 %v2313, %v2335
      %v2344 = vmul.f32 %v2315, %v2336
      %v2345 = vmul.f32 %v2317, %v2337
      %v2346 = vmul.f32 %v2319, %v2338
      %v2347 = vmul.f32 %v2321, %v2339
      %v2348 = vmul.f32 %v2323, %v2340
      %v2349 = vmul.f32 %v2325, %v2341
      %v2350 = vadd.f32 %v2085, %v2342
      %v2351 = vadd.f32 %v2086, %v2343
      %v2352 = vadd.f32 %v2087, %v2344
      %v2353 = vadd.f32 %v2088, %v2345
      %v2354 = vadd.f32 %v2089, %v2346
      %v2355 = vadd.f32 %v2090, %v2347
      %v2356 = vadd.f32 %v2091, %v2348
      %v2357 = vadd.f32 %v2092, %v2349
      %2358 = vst [vmem:[%s383] sm:$0xff] %v2350
      %2359 = vst [vmem:[%s383 + $0x8] sm:$0xff] %v2351
      %2360 = vst [vmem:[%s383 + $0x10] sm:$0xff] %v2352
      %2361 = vst [vmem:[%s383 + $0x18] sm:$0xff] %v2353
      %2362 = vst [vmem:[%s383 + $0x20] sm:$0xff] %v2354
      %2363 = vst [vmem:[%s383 + $0x28] sm:$0xff] %v2355
      %2364 = vst [vmem:[%s383 + $0x30] sm:$0xff] %v2356
      %2365 = vst [vmem:[%s383 + $0x38] sm:$0xff] %v2357
      %s2366 = smul.u32 8, %s21
      %p2367 = scmp.lt.s32.totalorder %s2366, 15
      %s2368 = scalar_select %p2367, %s2366, 15
      %s2369 = smul.addr %s2368, 8
      %s2370 = scalar_lea.vmem %s10, %s2369
      // Predicated region
      $region61: #{embedding_tag_ext_forward.1} parent=59 // pred_check
        %p2371 = pneg %p259
      $region62: #{embedding_tag_ext_forward.1} parent=59 // pred_check_branch
        %2373 = sbr.rel (%p2371) target = $region64
      $region63: #{embedding_tag_ext_forward.1} parent=59 // pred_region
        %s2374 = smul.u32 8, %s21
      $region64: #{embedding_tag_ext_forward.1} parent=59 // pred_fallthru
        _
    $region60: #{embedding_tag_ext_forward.1} parent=5 // pred_fallthru
      _
    %p2375 = scmp.le.s32.totalorder 2, %s16
    // Predicated region
    $region65: #{embedding_tag_ext_forward.1} parent=5 // pred_check
      %p2376 = pneg %p2375
    $region66: #{embedding_tag_ext_forward.1} parent=5 // pred_check_branch
      %2378 = sbr.rel (%p2376) target = $region68
    $region67: #{embedding_tag_ext_forward.1} parent=5 // pred_region
      %s2379 = ssub.s32 %s16, 2
      // Predicated region
      $region69: #{embedding_tag_ext_forward.1} parent=67 // pred_check
        %p2380 = pneg %p265
      $region70: #{embedding_tag_ext_forward.1} parent=67 // pred_check_branch
        %2382 = sbr.rel (%p2380) target = $region72
      $region71: #{embedding_tag_ext_forward.1} parent=67 // pred_region
        %s2383 = smul.u32 8, %s22
        %p2384 = scmp.lt.s32.totalorder %s2383, 15
        %s2385 = scalar_select %p2384, %s2383, 15
        %s2386 = smul.addr %s2385, 8
        %s2387 = scalar_lea.vmem %s10, %s2386
      $region72: #{embedding_tag_ext_forward.1} parent=67 // pred_fallthru
        _
    $region68: #{embedding_tag_ext_forward.1} parent=5 // pred_fallthru
      _
  $region6: #{embedding_tag_ext_forward.1} parent=0 // loop_footer
    %s20 = sadd.s32 1, %s16
  $region7: #{embedding_tag_ext_forward.1} parent=0 // loop_footer_branch
    %15 = sbr.rel target = $region3
  $region8: #{embedding_tag_ext_forward.1} parent=0 // loop_exit
    _

</llo_original>
